<compile_context>
chip_gen: v5e
topology: v5e:2x2
jax: 0.10.0
libtpu: 0.0.40
codegen_flags: <defaults>
</compile_context>

<pallas_src>
import functools

import jax
import jax.numpy as jnp
from jax.experimental import pallas as pl
from jax.experimental.pallas import tpu as pltpu


def _round_up(x, m):
    return (x + m - 1) // m * m


# ---------------------------------------------------------------------------
# Pallas kernel 1: tiled matmul (bf16 operands, f32 accumulation) with fused
# bias + LeakyReLU epilogue.  This is the transposed-conv hot path.
# ---------------------------------------------------------------------------
def _matmul_bias_act_kernel(a_ref, b_ref, bias_ref, o_ref, acc_ref, *, act, slope):
    k = pl.program_id(2)

    @pl.when(k == 0)
    def _():
        acc_ref[...] = jnp.zeros_like(acc_ref)

    acc_ref[...] += jnp.dot(a_ref[...], b_ref[...],
                            preferred_element_type=jnp.float32)

    @pl.when(k == pl.num_programs(2) - 1)
    def _():
        out = acc_ref[...] + bias_ref[...]          # f32 epilogue (v5e-safe)
        if act == "leaky":                          # nn.LeakyReLU default slope
            out = jnp.where(out >= 0, out, slope * out)
        o_ref[...] = out.astype(o_ref.dtype)


def matmul_bias_act(a, b, bias, act="none", slope=0.01):
    """act(a @ b + bias).  a:(M,K) b:(K,N) bias:(N,).  bf16 operands, f32 acc."""
    M, K = a.shape
    Kb, N = b.shape
    assert K == Kb

    # Large 128-multiple tiles; K tiled as deep as possible so the ~0.35us
    # per-grid-step overhead amortizes.
    tm = min(512, _round_up(M, 128))
    tn = min(512, _round_up(N, 128))
    tk = min(1024, _round_up(K, 128))
    Mp, Np, Kp = _round_up(M, tm), _round_up(N, tn), _round_up(K, tk)
    # v7x megacore: if the parallel grid degenerates to 1x1 but M is big enough,
    # split M so the second TensorCore gets work (no-op on v5e/v6e).
    if Mp // tm == 1 and Np // tn == 1 and Mp >= 256 and (Mp // 2) % 128 == 0:
        tm = Mp // 2

    # Pad only when needed (avoids an extra HBM copy for aligned layers).
    a_p = a if (Mp, Kp) == (M, K) else jnp.pad(a, ((0, Mp - M), (0, Kp - K)))
    b_p = b if (Kp, Np) == (K, N) else jnp.pad(b, ((0, Kp - K), (0, Np - N)))
    a_p = a_p.astype(jnp.bfloat16)      # MXU-native operands
    b_p = b_p.astype(jnp.bfloat16)
    bias_p = bias if Np == N else jnp.pad(bias, (0, Np - N))
    bias_p = bias_p.reshape(1, Np).astype(jnp.float32)

    # Explicit scoped-VMEM budget: v7x has 64 MiB physical (keep well under
    # ~48 MiB); v5e's default scoped limit is only 16 MiB.
    est = (2 * (tm * tk + tk * tn) * 2      # double-buffered bf16 A/B tiles
           + 2 * tm * tn * 4                # double-buffered f32 out tile
           + tm * tn * 4                    # f32 accumulator scratch
           + 2 * tn * 4)                    # bias
    vmem_limit = int(min(48 * 1024 * 1024, max(16 * 1024 * 1024, 2 * est)))

    out = pl.pallas_call(
        functools.partial(_matmul_bias_act_kernel, act=act, slope=slope),
        out_shape=jax.ShapeDtypeStruct((Mp, Np), jnp.float32),
        grid_spec=pltpu.PrefetchScalarGridSpec(
            num_scalar_prefetch=0,
            grid=(Mp // tm, Np // tn, Kp // tk),
            in_specs=[
                pl.BlockSpec((tm, tk), lambda i, j, k: (i, k)),
                pl.BlockSpec((tk, tn), lambda i, j, k: (k, j)),
                pl.BlockSpec((1, tn), lambda i, j, k: (0, j)),
            ],
            out_specs=pl.BlockSpec((tm, tn), lambda i, j, k: (i, j)),
            scratch_shapes=[pltpu.VMEM((tm, tn), jnp.float32)],
        ),
        compiler_params=pltpu.CompilerParams(
            dimension_semantics=("parallel", "parallel", "arbitrary"),
            vmem_limit_bytes=vmem_limit),
    )(a_p, b_p, bias_p)
    if (Mp, Np) != (M, N):
        out = out[:M, :N]
    return out


# ---------------------------------------------------------------------------
# Pallas kernels 2+3: InstanceNorm2d (affine=False, eps=1e-5), tiled over H*W
# with a two-pass (stats accumulate, then normalize) reduction.
# ---------------------------------------------------------------------------
def _in_stats_kernel(x_ref, sum_ref, sq_ref):
    t = pl.program_id(1)

    @pl.when(t == 0)
    def _():
        sum_ref[...] = jnp.zeros_like(sum_ref)
        sq_ref[...] = jnp.zeros_like(sq_ref)

    x = x_ref[...]                                   # (1, thw, C) f32
    sum_ref[...] += jnp.sum(x, axis=1, keepdims=True)
    sq_ref[...] += jnp.sum(x * x, axis=1, keepdims=True)


def _in_norm_kernel(x_ref, mean_ref, rstd_ref, o_ref):
    o_ref[...] = (x_ref[...] - mean_ref[...]) * rstd_ref[...]


def instance_norm(x, eps=1e-5):
    """x: NHWC.  Normalize over (H, W) per sample and channel (biased var)."""
    N, H, W, C = x.shape
    HW = H * W
    thw = min(512, _round_up(HW, 8))
    HWp = _round_up(HW, thw)
    xr = x.reshape(N, HW, C)
    if HWp != HW:
        xr = jnp.pad(xr, ((0, 0), (0, HWp - HW), (0, 0)))   # zero rows: no effect on sums
    grid = (N, HWp // thw)

    sums, sqs = pl.pallas_call(
        _in_stats_kernel,
        out_shape=(jax.ShapeDtypeStruct((N, 1, C), jnp.float32),
                   jax.ShapeDtypeStruct((N, 1, C), jnp.float32)),
        grid=grid,
        in_specs=[pl.BlockSpec((1, thw, C), lambda n, t: (n, t, 0))],
        out_specs=(pl.BlockSpec((1, 1, C), lambda n, t: (n, 0, 0)),
                   pl.BlockSpec((1, 1, C), lambda n, t: (n, 0, 0))),
        compiler_params=pltpu.CompilerParams(
            dimension_semantics=("parallel", "arbitrary")),
    )(xr)

    mean = sums / HW                                  # divide by true HW, not padded
    var = sqs / HW - mean * mean                      # biased variance (PyTorch IN)
    rstd = jax.lax.rsqrt(var + eps)

    out = pl.pallas_call(
        _in_norm_kernel,
        out_shape=jax.ShapeDtypeStruct((N, HWp, C), x.dtype),
        grid=grid,
        in_specs=[pl.BlockSpec((1, thw, C), lambda n, t: (n, t, 0)),
                  pl.BlockSpec((1, 1, C), lambda n, t: (n, 0, 0)),
                  pl.BlockSpec((1, 1, C), lambda n, t: (n, 0, 0))],
        out_specs=pl.BlockSpec((1, thw, C), lambda n, t: (n, t, 0)),
        compiler_params=pltpu.CompilerParams(
            dimension_semantics=("parallel", "parallel")),
    )(xr, mean, rstd)
    if HWp != HW:
        out = out[:, :HW, :]
    return out.reshape(N, H, W, C)


# ---------------------------------------------------------------------------
# ConvTranspose2d(k=3, s=2, p=1, output_padding=1) via 4-phase (sub-pixel)
# decomposition: out[2i+ry, 2j+rx] only touches x[i..i+1, j..j+1], so the whole
# op is one matmul over the un-dilated input's 2x2 taps (no zero-dilation, no
# 9x im2col).
# ---------------------------------------------------------------------------
def _kidx(r, d):
    # 1-D rule: out[2i + r] = sum_d x[i + d] * W[_kidx(r, d)]   (None => zero)
    if r == 0:
        return 1 if d == 0 else None
    return 2 if d == 0 else 0


def _subpixel_weight(w_pt, bias):
    """Pack PyTorch ConvTranspose2d weight (Cin, Cout, 3, 3) into (4*Cin, 4*Cout):
    rows = 2x2 input taps (dy, dx), cols = 2x2 output phases (ry, rx)."""
    Cin, Cout = w_pt.shape[0], w_pt.shape[1]
    rows = []
    for dy in (0, 1):
        for dx in (0, 1):
            cols = []
            for ry in (0, 1):
                for rx in (0, 1):
                    kh, kw = _kidx(ry, dy), _kidx(rx, dx)
                    if kh is None or kw is None:
                        cols.append(jnp.zeros((Cin, Cout), w_pt.dtype))
                    else:
                        cols.append(w_pt[:, :, kh, kw])
            rows.append(jnp.concatenate(cols, axis=1))
    w_big = jnp.concatenate(rows, axis=0)             # (4*Cin, 4*Cout)
    b_big = jnp.tile(bias, 4)                         # (4*Cout,)
    return w_big, b_big


def conv_transpose2d_s2_leaky(x, w_pt, bias, slope=0.01):
    """x: (N, H, W, Cin) NHWC; w_pt: PyTorch layout (Cin, Cout, 3, 3).
    Returns LeakyReLU(conv_transpose(x) + bias) of shape (N, 2H, 2W, Cout)."""
    Nb, H, W, Cin = x.shape
    Cout = w_pt.shape[1]

    # 2x2 neighborhood taps of the *un-dilated* input (pad bottom/right by 1).
    x_pad = jnp.pad(x, ((0, 0), (0, 1), (0, 1), (0, 0)))
    taps = [x_pad[:, dy:dy + H, dx:dx + W, :] for dy in (0, 1) for dx in (0, 1)]
    patches = jnp.concatenate(taps, axis=-1).reshape(Nb * H * W, 4 * Cin)

    w_big, b_big = _subpixel_weight(w_pt, bias)
    y = matmul_bias_act(patches, w_big, b_big, act="leaky", slope=slope)

    # depth-to-space: (.., 4*Cout) with phase order (ry, rx) -> (N, 2H, 2W, Cout)
    y = y.reshape(Nb, H, W, 2, 2, Cout)
    y = y.transpose(0, 1, 3, 2, 4, 5).reshape(Nb, 2 * H, 2 * W, Cout)
    return y


# ---------------------------------------------------------------------------
# Upsample forward (mirrors the PyTorch module) + deterministic init
# ---------------------------------------------------------------------------
def init_upsample_params(key, cin, cout):
    k1, k2 = jax.random.split(key)
    bound = 1.0 / jnp.sqrt(cout * 9.0)
    w = jax.random.uniform(k1, (cin, cout, 3, 3), jnp.float32, -bound, bound)
    b = jax.random.uniform(k2, (cout,), jnp.float32, -bound, bound)
    return {"w": w, "b": b}


def upsample_forward(params, x_nchw, is_drop=False):
    """Pallas forward of the PyTorch `Upsample` module (NCHW in / NCHW out)."""
    x = jnp.transpose(x_nchw, (0, 2, 3, 1))            # NCHW -> NHWC
    y = conv_transpose2d_s2_leaky(x, params["w"], params["b"])
    y = instance_norm(y)
    # TODO(synk): F.dropout2d(p=0.5) runs stochastically (training=True) in the
    # reference; it has no deterministic equivalent and is treated as identity.
    del is_drop
    return jnp.transpose(y, (0, 3, 1, 2))              # NHWC -> NCHW


def upsample_reference(params, x_nchw, eps=1e-5):
    """Plain-XLA f32 reference (ConvTranspose2d == lhs-dilated cross-correlation
    with the spatially flipped kernel, padding (1, 2))."""
    x = jnp.transpose(x_nchw, (0, 2, 3, 1))
    w_flip = jnp.transpose(params["w"][:, :, ::-1, ::-1], (2, 3, 0, 1))  # HWIO
    y = jax.lax.conv_general_dilated(
        x, w_flip, window_strides=(1, 1), padding=((1, 2), (1, 2)),
        lhs_dilation=(2, 2), dimension_numbers=("NHWC", "HWIO", "NHWC"))
    y = y + params["b"]
    y = jnp.where(y >= 0, y, 0.01 * y)
    mean = jnp.mean(y, axis=(1, 2), keepdims=True)
    var = jnp.mean((y - mean) ** 2, axis=(1, 2), keepdims=True)
    y = (y - mean) * jax.lax.rsqrt(var + eps)
    return jnp.transpose(y, (0, 3, 1, 2))


if __name__ == "__main__":
    key = jax.random.PRNGKey(0)
    pkey, xkey = jax.random.split(key)

    in_channels, out_channels = 4, 8
    params = init_upsample_params(pkey, in_channels, out_channels)
    x = jax.random.normal(xkey, (2, in_channels, 16, 16), jnp.float32)

    fwd = jax.jit(upsample_forward)
    y = jax.block_until_ready(fwd(params, x))
    assert y.shape == (2, out_channels, 32, 32), y.shape
    assert bool(jnp.all(jnp.isfinite(y)))

    # Loose numerical check (bf16 MXU operands vs f32 reference).
    y_ref = upsample_reference(params, x)
    err = float(jnp.max(jnp.abs(y - y_ref)))
    assert err < 0.1, f"max abs err {err}"

    print("KERNEL_OK")
</pallas_src>

<mosaic_0001>
module attributes {stable_mosaic.version = 11 : i64} {
  func.func @_matmul_bias_act_kernel(%arg0: i32, %arg1: i32, %arg2: i32, %arg3: memref<256x128xbf16, #tpu.memory_space<vmem>>, %arg4: memref<128x128xbf16, #tpu.memory_space<vmem>>, %arg5: memref<1x128xf32, #tpu.memory_space<vmem>>, %arg6: memref<256x128xf32, #tpu.memory_space<vmem>>, %arg7: memref<256x128xf32, #tpu.memory_space<vmem>>) attributes {dimension_semantics = [#tpu.dimension_semantics<parallel>, #tpu.dimension_semantics<parallel>, #tpu.dimension_semantics<arbitrary>], iteration_bounds = array<i64: 2, 1, 1>, scalar_prefetch = 0 : i64, scratch_operands = 1 : i64, tpu.core_type = #tpu.core_type<tc>, window_params = [{transform_indices = @transform_0, window_bounds = array<i64: 256, 128>}, {transform_indices = @transform_1, window_bounds = array<i64: 128, 128>}, {transform_indices = @transform_2, window_bounds = array<i64: 1, 128>}, {transform_indices = @transform_3, window_bounds = array<i64: 256, 128>}]} {
    %c0_i32 = arith.constant 0 : i32
    %0 = arith.cmpi eq, %arg2, %c0_i32 : i32
    %1 = arith.extui %0 : i1 to i32
    %c0_i32_0 = arith.constant 0 : i32
    %2 = arith.cmpi ne, %1, %c0_i32_0 : i32
    scf.if %2 {
      %cst_10 = arith.constant 0.000000e+00 : f32
      %12 = vector.broadcast %cst_10 : f32 to vector<256x128xf32>
      %c0_11 = arith.constant 0 : index
      %c0_12 = arith.constant 0 : index
      %13 = vector.load %arg7[%c0_11, %c0_12] : memref<256x128xf32, #tpu.memory_space<vmem>>, vector<256x128xf32>
      tpu.vector_store %arg7[%c0_11, %c0_12], %12 {strides = array<i32>} : memref<256x128xf32, #tpu.memory_space<vmem>>, vector<256x128xf32>,
    } else {
    }
    %c0 = arith.constant 0 : index
    %c0_1 = arith.constant 0 : index
    %3 = vector.load %arg7[%c0, %c0_1] : memref<256x128xf32, #tpu.memory_space<vmem>>, vector<256x128xf32>
    %c0_2 = arith.constant 0 : index
    %c0_3 = arith.constant 0 : index
    %4 = vector.load %arg3[%c0_2, %c0_3] : memref<256x128xbf16, #tpu.memory_space<vmem>>, vector<256x128xbf16>
    %c0_4 = arith.constant 0 : index
    %c0_5 = arith.constant 0 : index
    %5 = vector.load %arg4[%c0_4, %c0_5] : memref<128x128xbf16, #tpu.memory_space<vmem>>, vector<128x128xbf16>
    %cst = arith.constant dense<0.000000e+00> : vector<256x128xf32>
    %6 = tpu.matmul %4, %5, %cst {dimension_numbers = #tpu.dot_dimension_numbers<[1], [0], [0], [1], [0, 0, 1, 1], [], []>} : vector<256x128xbf16>, vector<128x128xbf16>, vector<256x128xf32> -> vector<256x128xf32>
    %7 = arith.addf %3, %6 : vector<256x128xf32>
    %c0_6 = arith.constant 0 : index
    %c0_7 = arith.constant 0 : index
    %8 = vector.load %arg7[%c0_6, %c0_7] : memref<256x128xf32, #tpu.memory_space<vmem>>, vector<256x128xf32>
    tpu.vector_store %arg7[%c0_6, %c0_7], %7 {strides = array<i32>} : memref<256x128xf32, #tpu.memory_space<vmem>>, vector<256x128xf32>,
    %c0_i32_8 = arith.constant 0 : i32
    %9 = arith.cmpi eq, %arg2, %c0_i32_8 : i32
    %10 = arith.extui %9 : i1 to i32
    %c0_i32_9 = arith.constant 0 : i32
    %11 = arith.cmpi ne, %10, %c0_i32_9 : i32
    scf.if %11 {
      %c0_10 = arith.constant 0 : index
      %c0_11 = arith.constant 0 : index
      %12 = vector.load %arg7[%c0_10, %c0_11] : memref<256x128xf32, #tpu.memory_space<vmem>>, vector<256x128xf32>
      %c0_12 = arith.constant 0 : index
      %c0_13 = arith.constant 0 : index
      %13 = vector.load %arg5[%c0_12, %c0_13] : memref<1x128xf32, #tpu.memory_space<vmem>>, vector<1x128xf32>
      %14 = vector.broadcast %13 : vector<1x128xf32> to vector<256x128xf32>
      %15 = arith.addf %12, %14 : vector<256x128xf32>
      %cst_14 = arith.constant 0.000000e+00 : f32
      %16 = vector.broadcast %cst_14 : f32 to vector<256x128xf32>
      %17 = arith.cmpf oge, %15, %16 : vector<256x128xf32>
      %cst_15 = arith.constant 0.00999999977 : f32
      %18 = vector.broadcast %cst_15 : f32 to vector<256x128xf32>
      %19 = arith.mulf %18, %15 : vector<256x128xf32>
      %20 = arith.select %17, %15, %19 : vector<256x128xi1>, vector<256x128xf32>
      %c0_16 = arith.constant 0 : index
      %c0_17 = arith.constant 0 : index
      %21 = vector.load %arg6[%c0_16, %c0_17] : memref<256x128xf32, #tpu.memory_space<vmem>>, vector<256x128xf32>
      tpu.vector_store %arg6[%c0_16, %c0_17], %20 {strides = array<i32>} : memref<256x128xf32, #tpu.memory_space<vmem>>, vector<256x128xf32>,
    } else {
    }
    return
  }
  func.func @transform_0(%arg0: i32, %arg1: i32, %arg2: i32) -> (i32, i32) {
    %c0_i32 = arith.constant 0 : i32
    return %arg0, %arg2 : i32, i32
  }
  func.func @transform_1(%arg0: i32, %arg1: i32, %arg2: i32) -> (i32, i32) {
    %c0_i32 = arith.constant 0 : i32
    return %arg2, %arg1 : i32, i32
  }
  func.func @transform_2(%arg0: i32, %arg1: i32, %arg2: i32) -> (i32, i32) {
    %c0_i32 = arith.constant 0 : i32
    %c0_i32_0 = arith.constant 0 : i32
    return %c0_i32, %arg1 : i32, i32
  }
  func.func @transform_3(%arg0: i32, %arg1: i32, %arg2: i32) -> (i32, i32) {
    %c0_i32 = arith.constant 0 : i32
    return %arg0, %arg1 : i32, i32
  }
}

module attributes {stable_mosaic.version = 11 : i64} {
  func.func @_in_stats_kernel(%arg0: i32, %arg1: i32, %arg2: memref<1x512x8xf32, #tpu.memory_space<vmem>>, %arg3: memref<1x1x8xf32, #tpu.memory_space<vmem>>, %arg4: memref<1x1x8xf32, #tpu.memory_space<vmem>>) attributes {dimension_semantics = [#tpu.dimension_semantics<parallel>, #tpu.dimension_semantics<arbitrary>], iteration_bounds = array<i64: 2, 2>, scalar_prefetch = 0 : i64, scratch_operands = 0 : i64, tpu.core_type = #tpu.core_type<tc>, window_params = [{transform_indices = @transform_0, window_bounds = array<i64: 1, 512, 8>}, {transform_indices = @transform_1, window_bounds = array<i64: 1, 1, 8>}, {transform_indices = @transform_2, window_bounds = array<i64: 1, 1, 8>}]} {
    %c0_i32 = arith.constant 0 : i32
    %0 = arith.cmpi eq, %arg1, %c0_i32 : i32
    %1 = arith.extui %0 : i1 to i32
    %c0_i32_0 = arith.constant 0 : i32
    %2 = arith.cmpi ne, %1, %c0_i32_0 : i32
    scf.if %2 {
      %cst_16 = arith.constant 0.000000e+00 : f32
      %15 = vector.broadcast %cst_16 : f32 to vector<1x1x8xf32>
      %c0_17 = arith.constant 0 : index
      %c0_18 = arith.constant 0 : index
      %c0_19 = arith.constant 0 : index
      %16 = vector.load %arg3[%c0_17, %c0_18, %c0_19] : memref<1x1x8xf32, #tpu.memory_space<vmem>>, vector<1x1x8xf32>
      tpu.vector_store %arg3[%c0_17, %c0_18, %c0_19], %15 {strides = array<i32>} : memref<1x1x8xf32, #tpu.memory_space<vmem>>, vector<1x1x8xf32>,
      %cst_20 = arith.constant 0.000000e+00 : f32
      %17 = vector.broadcast %cst_20 : f32 to vector<1x1x8xf32>
      %c0_21 = arith.constant 0 : index
      %c0_22 = arith.constant 0 : index
      %c0_23 = arith.constant 0 : index
      %18 = vector.load %arg4[%c0_21, %c0_22, %c0_23] : memref<1x1x8xf32, #tpu.memory_space<vmem>>, vector<1x1x8xf32>
      tpu.vector_store %arg4[%c0_21, %c0_22, %c0_23], %17 {strides = array<i32>} : memref<1x1x8xf32, #tpu.memory_space<vmem>>, vector<1x1x8xf32>,
    } else {
    }
    %c0 = arith.constant 0 : index
    %c0_1 = arith.constant 0 : index
    %c0_2 = arith.constant 0 : index
    %3 = vector.load %arg2[%c0, %c0_1, %c0_2] : memref<1x512x8xf32, #tpu.memory_space<vmem>>, vector<1x512x8xf32>
    %c0_3 = arith.constant 0 : index
    %c0_4 = arith.constant 0 : index
    %c0_5 = arith.constant 0 : index
    %4 = vector.load %arg3[%c0_3, %c0_4, %c0_5] : memref<1x1x8xf32, #tpu.memory_space<vmem>>, vector<1x1x8xf32>
    %cst = arith.constant dense<0.000000e+00> : vector<1x8xf32>
    %5 = vector.multi_reduction <add>, %3, %cst [1] : vector<1x512x8xf32> to vector<1x8xf32>
    %6 = vector.shape_cast %5 : vector<1x8xf32> to vector<1x1x8xf32>
    %7 = arith.addf %4, %6 : vector<1x1x8xf32>
    %c0_6 = arith.constant 0 : index
    %c0_7 = arith.constant 0 : index
    %c0_8 = arith.constant 0 : index
    %8 = vector.load %arg3[%c0_6, %c0_7, %c0_8] : memref<1x1x8xf32, #tpu.memory_space<vmem>>, vector<1x1x8xf32>
    tpu.vector_store %arg3[%c0_6, %c0_7, %c0_8], %7 {strides = array<i32>} : memref<1x1x8xf32, #tpu.memory_space<vmem>>, vector<1x1x8xf32>,
    %c0_9 = arith.constant 0 : index
    %c0_10 = arith.constant 0 : index
    %c0_11 = arith.constant 0 : index
    %9 = vector.load %arg4[%c0_9, %c0_10, %c0_11] : memref<1x1x8xf32, #tpu.memory_space<vmem>>, vector<1x1x8xf32>
    %10 = arith.mulf %3, %3 : vector<1x512x8xf32>
    %cst_12 = arith.constant dense<0.000000e+00> : vector<1x8xf32>
    %11 = vector.multi_reduction <add>, %10, %cst_12 [1] : vector<1x512x8xf32> to vector<1x8xf32>
    %12 = vector.shape_cast %11 : vector<1x8xf32> to vector<1x1x8xf32>
    %13 = arith.addf %9, %12 : vector<1x1x8xf32>
    %c0_13 = arith.constant 0 : index
    %c0_14 = arith.constant 0 : index
    %c0_15 = arith.constant 0 : index
    %14 = vector.load %arg4[%c0_13, %c0_14, %c0_15] : memref<1x1x8xf32, #tpu.memory_space<vmem>>, vector<1x1x8xf32>
    tpu.vector_store %arg4[%c0_13, %c0_14, %c0_15], %13 {strides = array<i32>} : memref<1x1x8xf32, #tpu.memory_space<vmem>>, vector<1x1x8xf32>,
    return
  }
  func.func @transform_0(%arg0: i32, %arg1: i32) -> (i32, i32, i32) {
    %c0_i32 = arith.constant 0 : i32
    %c0_i32_0 = arith.constant 0 : i32
    return %arg0, %arg1, %c0_i32 : i32, i32, i32
  }
  func.func @transform_1(%arg0: i32, %arg1: i32) -> (i32, i32, i32) {
    %c0_i32 = arith.constant 0 : i32
    %c0_i32_0 = arith.constant 0 : i32
    %c0_i32_1 = arith.constant 0 : i32
    return %arg0, %c0_i32, %c0_i32_0 : i32, i32, i32
  }
  func.func @transform_2(%arg0: i32, %arg1: i32) -> (i32, i32, i32) {
    %c0_i32 = arith.constant 0 : i32
    %c0_i32_0 = arith.constant 0 : i32
    %c0_i32_1 = arith.constant 0 : i32
    return %arg0, %c0_i32, %c0_i32_0 : i32, i32, i32
  }
}

module attributes {stable_mosaic.version = 11 : i64} {
  func.func @_in_norm_kernel(%arg0: i32, %arg1: i32, %arg2: memref<1x512x8xf32, #tpu.memory_space<vmem>>, %arg3: memref<1x1x8xf32, #tpu.memory_space<vmem>>, %arg4: memref<1x1x8xf32, #tpu.memory_space<vmem>>, %arg5: memref<1x512x8xf32, #tpu.memory_space<vmem>>) attributes {dimension_semantics = [#tpu.dimension_semantics<parallel>, #tpu.dimension_semantics<parallel>], iteration_bounds = array<i64: 2, 2>, scalar_prefetch = 0 : i64, scratch_operands = 0 : i64, tpu.core_type = #tpu.core_type<tc>, window_params = [{transform_indices = @transform_0, window_bounds = array<i64: 1, 512, 8>}, {transform_indices = @transform_1, window_bounds = array<i64: 1, 1, 8>}, {transform_indices = @transform_2, window_bounds = array<i64: 1, 1, 8>}, {transform_indices = @transform_3, window_bounds = array<i64: 1, 512, 8>}]} {
    %c0 = arith.constant 0 : index
    %c0_0 = arith.constant 0 : index
    %c0_1 = arith.constant 0 : index
    %0 = vector.load %arg2[%c0, %c0_0, %c0_1] : memref<1x512x8xf32, #tpu.memory_space<vmem>>, vector<1x512x8xf32>
    %c0_2 = arith.constant 0 : index
    %c0_3 = arith.constant 0 : index
    %c0_4 = arith.constant 0 : index
    %1 = vector.load %arg3[%c0_2, %c0_3, %c0_4] : memref<1x1x8xf32, #tpu.memory_space<vmem>>, vector<1x1x8xf32>
    %2 = vector.broadcast %1 : vector<1x1x8xf32> to vector<1x512x8xf32>
    %3 = arith.subf %0, %2 : vector<1x512x8xf32>
    %c0_5 = arith.constant 0 : index
    %c0_6 = arith.constant 0 : index
    %c0_7 = arith.constant 0 : index
    %4 = vector.load %arg4[%c0_5, %c0_6, %c0_7] : memref<1x1x8xf32, #tpu.memory_space<vmem>>, vector<1x1x8xf32>
    %5 = vector.broadcast %4 : vector<1x1x8xf32> to vector<1x512x8xf32>
    %6 = arith.mulf %3, %5 : vector<1x512x8xf32>
    %c0_8 = arith.constant 0 : index
    %c0_9 = arith.constant 0 : index
    %c0_10 = arith.constant 0 : index
    %7 = vector.load %arg5[%c0_8, %c0_9, %c0_10] : memref<1x512x8xf32, #tpu.memory_space<vmem>>, vector<1x512x8xf32>
    tpu.vector_store %arg5[%c0_8, %c0_9, %c0_10], %6 {strides = array<i32>} : memref<1x512x8xf32, #tpu.memory_space<vmem>>, vector<1x512x8xf32>,
    return
  }
  func.func @transform_0(%arg0: i32, %arg1: i32) -> (i32, i32, i32) {
    %c0_i32 = arith.constant 0 : i32
    %c0_i32_0 = arith.constant 0 : i32
    return %arg0, %arg1, %c0_i32 : i32, i32, i32
  }
  func.func @transform_1(%arg0: i32, %arg1: i32) -> (i32, i32, i32) {
    %c0_i32 = arith.constant 0 : i32
    %c0_i32_0 = arith.constant 0 : i32
    %c0_i32_1 = arith.constant 0 : i32
    return %arg0, %c0_i32, %c0_i32_0 : i32, i32, i32
  }
  func.func @transform_2(%arg0: i32, %arg1: i32) -> (i32, i32, i32) {
    %c0_i32 = arith.constant 0 : i32
    %c0_i32_0 = arith.constant 0 : i32
    %c0_i32_1 = arith.constant 0 : i32
    return %arg0, %c0_i32, %c0_i32_0 : i32, i32, i32
  }
  func.func @transform_3(%arg0: i32, %arg1: i32) -> (i32, i32, i32) {
    %c0_i32 = arith.constant 0 : i32
    %c0_i32_0 = arith.constant 0 : i32
    return %arg0, %arg1, %c0_i32 : i32, i32, i32
  }
}

</mosaic_0001>

<llo_original>
// kernel: tile.8
$region0: #{tile.8}
  #allocation2 [shape = 's32[1]{0}', space=sflag, size = 0x4, scoped, tag = 'scoped memory for tile.8']
  %s0 = inlined_call_operand.hbm [shape: f32[8], index: 0, kind: input, shape index: {}]
  %s1 = inlined_call_operand.vmem [shape: f32[4,8], index: 1, kind: output, shape index: {}]
  $region1: #{tile.8} parent=0
    #allocation0 [shape = 'u8[512]{0}', space=vmem, size = 0x400, scoped, tag = 'operand span for operand 0']
    #allocation1 [shape = 's32[1]{0}', space=sflag, size = 0x4, scoped, tag = 'scoped memory for tile.8']
    %2 = vsyncpa [#allocation1], 0
    // Predicated region
    $region2: #{tile.8} parent=1 // pred_check
      _
    $region3: #{tile.8} parent=1 // pred_check_branch
      %4 = sbr.rel (0) target = $region5
    $region4: #{tile.8} parent=1 // pred_region
      %6 = vsyncadd [#allocation1], 0
      %s8 = sshll.u32 %s0, 4
      %s9 = int_to_ptr.hbm [resolvable:$true] %s8
      %s10 = sshll.u32 [#allocation0], 4
      %s11 = int_to_ptr.vmem [resolvable:$true] %s10
      %13 = dma.hbm_to_vmem [thread:$0]  %s9, 16, %s11, [#allocation1]
    $region5: #{tile.8} parent=1 // pred_fallthru
      _
    // Predicated region
    $region6: #{tile.8} parent=1 // pred_check
      _
    $region7: #{tile.8} parent=1 // pred_check_branch
      %15 = sbr.rel (0) target = $region9
    $region8: #{tile.8} parent=1 // pred_region
      %17 = dma.done [#allocation1], 16
    $region9: #{tile.8} parent=1 // pred_fallthru
      _
    %v18 = vld [vmem:[#allocation0] ss:$0 sm:$0xff]
    %19 = vst [vmem:[%s1] sm:$0xf] %v18
    %20 = vsyncpa [#allocation1], 1

// kernel: tile.9
$region0: #{tile.9}
  %s0 = inlined_call_operand.vmem [shape: f32[4,8], index: 0, kind: input, shape index: {}]
  %s1 = inlined_call_operand.vmem [shape: f32[32], index: 1, kind: output, shape index: {}]
  $region1: #{tile.9} parent=0
    #allocation0 [shape = 'u8[4096]{0}', space=vmem, size = 0x1000, scoped, tag = 'scoped mem for output reshape']
    #allocation1 [shape = 'u8[4096]{0}', space=vmem, size = 0x1000, scoped, tag = 'scoped mem for input reshape']
    %s3 = ssub.s32 16, 1
    %v4 = vld [vmem:[%s0] sm:%s3]
    %5 = vst [vmem:[#allocation1] sm:%s3] %v4
    %v6 = vld [vmem:[#allocation1] sm:$0x1]
    %vm7 = vcmask 64512
    %8 = vst.msk [vmem:[#allocation0] sm:$0x1] %vm7, %v6
    %s9 = scalar_lea.vmem [#allocation1], 3
    %v10 = vld [vmem:[%s9] sm:$0x1]
    %11 = vrot.lane.b32.xlu0 %v10, 24
    %v12 = vpop.permute.xlu0 %11
    %vm13 = vcmask 261312
    %14 = vst.msk [vmem:[#allocation0] sm:$0x1] %vm13, %v12
    %s15 = scalar_lea.vmem [#allocation1], 2
    %v16 = vld [vmem:[%s15] sm:$0x1]
    %17 = vrot.lane.b32.xlu0 %v16, 16
    %v18 = vpop.permute.xlu0 %17
    %vm19 = vcmask 195712
    %20 = vst.msk [vmem:[#allocation0] sm:$0x1] %vm19, %v18
    %s21 = scalar_lea.vmem [#allocation1], 1
    %v22 = vld [vmem:[%s21] sm:$0x1]
    %23 = vrot.lane.b32.xlu0 %v22, 8
    %v24 = vpop.permute.xlu0 %23
    %vm25 = vcmask 130112
    %26 = vst.msk [vmem:[#allocation0] sm:$0x1] %vm25, %v24
    %s28 = ssub.s32 2, 1
    %v29 = vld [vmem:[#allocation0] sm:%s28]
    %s31 = ssub.s32 2, 1
    %32 = vst [vmem:[%s1] sm:%s31] %v29

// kernel: upsample_forward.3
$region0: #{upsample_forward.3}
  #allocation0 [shape = 'u32[]', space=smem, size = 0x4, offset = 0x4, fixed_abs, tag = 'smem constant byte address 0x4 - core index']
  #allocation1 [shape = 'u32[72,128]{1,0:T(1,128)}', space=vmem, size = 0x9000, scoped, tag = 'internal scratch']
  #allocation2 [shape = 'f32[256,128]{1,0:T(8,128)}', space=vmem, size = 0x20000, scoped, tag = 'scratch operand']
  %s0 = inlined_call_operand.vmem [shape: bf16[512,128], index: 0, kind: input, shape index: {}]
  %s1 = inlined_call_operand.vmem [shape: bf16[128,128], index: 1, kind: input, shape index: {}]
  %s2 = inlined_call_operand.vmem [shape: f32[1,128], index: 2, kind: input, shape index: {}]
  %s3 = inlined_call_operand.vmem [shape: f32[512,128], index: 3, kind: output, shape index: {}]
  %s4 = sld [smem:[#allocation0]]
  $region53: #{upsample_forward.3} parent=0
    _
  %s6 = ssub.s32 1, %s4
  %s7 = scalar_select 0, %s6, %s4
  loop: start=0, step=1, limit=4
  $region2: #{upsample_forward.3} parent=0 // loop_pre_header
    _
  $region3: #{upsample_forward.3} parent=0 // loop_header
    %s9 = sphi 0, %s13
    %p10 = scmp.ge.s32.totalorder %s9, 4
    %s16 = sphi 0, %s35
    %s17 = sphi 0, %s31
    %s18 = sphi 0, %s27
    %s19 = sphi 0, %s16
    %s20 = sphi 0, %s17
    %s21 = sphi 0, %s18
    %s22 = sphi 0, %s19
    %s23 = sphi 0, %s20
    %s24 = sphi 0, %s21
    %s40 = sphi 0, %s42
    %s43 = sphi 0, %s40
    %s44 = sphi 0, %s43
    %s60 = sphi 0, %s44
    %s68 = sphi 0, %s70
    %s71 = sphi 0, %s68
    %s72 = sphi 0, %s71
    %s88 = sphi 0, %s72
    %s94 = sphi 0, %s96
    %s97 = sphi 0, %s94
    %s98 = sphi 0, %s97
    %s114 = sphi 0, %s98
    %s122 = sphi 0, %s124
    %s125 = sphi 0, %s122
    %s126 = sphi 0, %s125
    %s142 = sphi 0, %s126
  $region4: #{upsample_forward.3} parent=0 // loop_header_branch
    %12 = sbr.rel (%p10) target = $region8
  $region5: #{upsample_forward.3} parent=0 // loop_body
    %s14 = ssub.s32 %s9, 1
    %s15 = ssub.s32 %s9, 2
    %s25 = sadd.s32 1, %s18
    %p26 = scmp.ge.s32.totalorder %s25, 1
    %s27 = scalar_select %p26, 0, %s25
    %s28 = sadd.s32 1, %s17
    %s29 = scalar_select %p26, %s28, %s17
    %p30 = scmp.ge.s32.totalorder %s29, 1
    %s31 = scalar_select %p30, 0, %s29
    %s32 = sadd.s32 1, %s16
    %s33 = scalar_select %p30, %s32, %s16
    %p34 = scmp.ge.s32.totalorder %s33, 2
    %s35 = scalar_select %p34, 0, %s33
    %s36 = ssub.s32 %s16, %s35
    %s37 = ssub.s32 %s18, %s27
    %s38 = sor.u32 %s36, %s37
    %p39 = scmp.eq.s32.totalorder %s38, 0
    %s41 = sadd.s32 %s40, 1
    %s42 = scalar_select %p39, %s40, %s41
    %p45 = pneg %p39
    %p46 = scmp.eq.s32.totalorder %s9, 1
    %p47 = por %p45, %p46
    %p48 = scmp.ne.s32.totalorder %s40, %s43
    %p49 = scmp.eq.s32.totalorder %s9, 0
    %p50 = por %p48, %p49
    %p51 = scmp.ne.s32.totalorder %s40, %s43
    %p52 = scmp.eq.s32.totalorder %s14, 1
    %p53 = por %p51, %p52
    %p54 = scmp.ne.s32.totalorder %s43, %s44
    %p55 = scmp.eq.s32.totalorder %s14, 0
    %p56 = por %p54, %p55
    %p57 = scmp.ne.s32.totalorder %s43, %s44
    %p58 = scmp.eq.s32.totalorder %s15, 1
    %p59 = por %p57, %p58
    %p61 = scmp.ne.s32.totalorder %s44, %s60
    %p62 = scmp.eq.s32.totalorder %s15, 0
    %p63 = por %p61, %p62
    %s64 = ssub.s32 %s18, %s27
    %s65 = ssub.s32 %s17, %s31
    %s66 = sor.u32 %s64, %s65
    %p67 = scmp.eq.s32.totalorder %s66, 0
    %s69 = sadd.s32 %s68, 1
    %s70 = scalar_select %p67, %s68, %s69
    %p73 = pneg %p67
    %p74 = scmp.eq.s32.totalorder %s9, 1
    %p75 = por %p73, %p74
    %p76 = scmp.ne.s32.totalorder %s68, %s71
    %p77 = scmp.eq.s32.totalorder %s9, 0
    %p78 = por %p76, %p77
    %p79 = scmp.ne.s32.totalorder %s68, %s71
    %p80 = scmp.eq.s32.totalorder %s14, 1
    %p81 = por %p79, %p80
    %p82 = scmp.ne.s32.totalorder %s71, %s72
    %p83 = scmp.eq.s32.totalorder %s14, 0
    %p84 = por %p82, %p83
    %p85 = scmp.ne.s32.totalorder %s71, %s72
    %p86 = scmp.eq.s32.totalorder %s15, 1
    %p87 = por %p85, %p86
    %p89 = scmp.ne.s32.totalorder %s72, %s88
    %p90 = scmp.eq.s32.totalorder %s15, 0
    %p91 = por %p89, %p90
    %s92 = ssub.s32 %s17, %s31
    %p93 = scmp.eq.s32.totalorder %s92, 0
    %s95 = sadd.s32 %s94, 1
    %s96 = scalar_select %p93, %s94, %s95
    %p99 = pneg %p93
    %p100 = scmp.eq.s32.totalorder %s9, 1
    %p101 = por %p99, %p100
    %p102 = scmp.ne.s32.totalorder %s94, %s97
    %p103 = scmp.eq.s32.totalorder %s9, 0
    %p104 = por %p102, %p103
    %p105 = scmp.ne.s32.totalorder %s94, %s97
    %p106 = scmp.eq.s32.totalorder %s14, 1
    %p107 = por %p105, %p106
    %p108 = scmp.ne.s32.totalorder %s97, %s98
    %p109 = scmp.eq.s32.totalorder %s14, 0
    %p110 = por %p108, %p109
    %p111 = scmp.ne.s32.totalorder %s97, %s98
    %p112 = scmp.eq.s32.totalorder %s15, 1
    %p113 = por %p111, %p112
    %p115 = scmp.ne.s32.totalorder %s98, %s114
    %p116 = scmp.eq.s32.totalorder %s15, 0
    %p117 = por %p115, %p116
    %s118 = ssub.s32 %s16, %s35
    %s119 = ssub.s32 %s17, %s31
    %s120 = sor.u32 %s118, %s119
    %p121 = scmp.eq.s32.totalorder %s120, 0
    %s123 = sadd.s32 %s122, 1
    %s124 = scalar_select %p121, %s122, %s123
    %p127 = pneg %p121
    %p128 = scmp.eq.s32.totalorder %s9, 1
    %p129 = por %p127, %p128
    %p130 = scmp.ne.s32.totalorder %s122, %s125
    %p131 = scmp.eq.s32.totalorder %s9, 0
    %p132 = por %p130, %p131
    %p133 = scmp.ne.s32.totalorder %s122, %s125
    %p134 = scmp.eq.s32.totalorder %s14, 1
    %p135 = por %p133, %p134
    %p136 = scmp.ne.s32.totalorder %s125, %s126
    %p137 = scmp.eq.s32.totalorder %s14, 0
    %p138 = por %p136, %p137
    %p139 = scmp.ne.s32.totalorder %s125, %s126
    %p140 = scmp.eq.s32.totalorder %s15, 1
    %p141 = por %p139, %p140
    %p143 = scmp.ne.s32.totalorder %s126, %s142
    %p144 = scmp.eq.s32.totalorder %s15, 0
    %p145 = por %p143, %p144
    %p146 = scmp.le.s32.totalorder 1, %s9
    %p147 = scmp.lt.s32.totalorder %s9, 3
    %p148 = pnand %p146, %p147
    %p149 = pneg %p148
    // Predicated region
    $region9: #{upsample_forward.3} parent=5 // pred_check
      _
    $region10: #{upsample_forward.3} parent=5 // pred_check_branch
      %151 = sbr.rel (%p148) target = $region12
    $region11: #{upsample_forward.3} parent=5 // pred_region
      %s152 = ssub.s32 %s9, 1
      // Predicated region
      $region13: #{upsample_forward.3} parent=11 // pred_check
        %p153 = pneg %p84
      $region14: #{upsample_forward.3} parent=11 // pred_check_branch
        %155 = sbr.rel (%p153) target = $region16
      $region15: #{upsample_forward.3} parent=11 // pred_region
        %s156 = smul.u32 16, %s21
        %p157 = scmp.lt.s32.totalorder %s156, 15
        %s158 = scalar_select %p157, %s156, 15
        %p159 = scmp.lt.s32.totalorder %s20, 0
        %s160 = scalar_select %p159, %s20, 0
        %s161 = sadd.s32 %s160, %s158
        %s162 = smul.addr %s161, 4
        %s163 = scalar_lea.vmem %s1, %s162
        %s164 = smul.u32 16, %s21
      $region16: #{upsample_forward.3} parent=11 // pred_fallthru
        _
      // Predicated region
      $region17: #{upsample_forward.3} parent=11 // pred_check
        %p165 = pneg %p110
      $region18: #{upsample_forward.3} parent=11 // pred_check_branch
        %167 = sbr.rel (%p165) target = $region20
      $region19: #{upsample_forward.3} parent=11 // pred_region
        %p168 = scmp.lt.s32.totalorder %s20, 0
        %s169 = scalar_select %p168, %s20, 0
        %s170 = scalar_lea.vmem %s2, %s169
      $region20: #{upsample_forward.3} parent=11 // pred_fallthru
        _
    $region12: #{upsample_forward.3} parent=5 // pred_fallthru
      _
    %p171 = scmp.lt.s32.totalorder %s9, 2
    // Predicated region
    $region21: #{upsample_forward.3} parent=5 // pred_check
      %p172 = pneg %p171
    $region22: #{upsample_forward.3} parent=5 // pred_check_branch
      %174 = sbr.rel (%p172) target = $region24
    $region23: #{upsample_forward.3} parent=5 // pred_region
      // Predicated region
      $region25: #{upsample_forward.3} parent=23 // pred_check
        %p175 = pneg %p50
      $region26: #{upsample_forward.3} parent=23 // pred_check_branch
        %177 = sbr.rel (%p175) target = $region28
      $region27: #{upsample_forward.3} parent=23 // pred_region
        %s178 = smul.u32 32, %s16
        %p179 = scmp.lt.s32.totalorder %s178, 63
        %s180 = scalar_select %p179, %s178, 63
        %p181 = scmp.lt.s32.totalorder %s18, 0
        %s182 = scalar_select %p181, %s18, 0
        %s183 = sadd.s32 %s182, %s180
        %s184 = smul.addr %s183, 4
        %s185 = scalar_lea.vmem %s0, %s184
        %s186 = smul.u32 32, %s16
      $region28: #{upsample_forward.3} parent=23 // pred_fallthru
        _
    $region24: #{upsample_forward.3} parent=5 // pred_fallthru
      _
    %p187 = scmp.le.s32.totalorder 1, %s9
    %p188 = scmp.lt.s32.totalorder %s9, 3
    %p189 = pnand %p187, %p188
    %p190 = pneg %p189
    // Predicated region
    $region29: #{upsample_forward.3} parent=5 // pred_check
      _
    $region30: #{upsample_forward.3} parent=5 // pred_check_branch
      %192 = sbr.rel (%p189) target = $region32
    $region31: #{upsample_forward.3} parent=5 // pred_region
      %s193 = ssub.s32 %s9, 1
      %s194 = smul.u32 32, %s19
      %p195 = scmp.lt.s32.totalorder %s194, 63
      %s196 = scalar_select %p195, %s194, 63
      %p197 = scmp.lt.s32.totalorder %s21, 0
      %s198 = scalar_select %p197, %s21, 0
      %s199 = sadd.s32 %s198, %s196
      %s200 = smul.addr %s199, 4
      %s201 = scalar_lea.vmem %s0, %s200
      %p202 = pneg %p56
      %p203 = pneg %p53
      %s204 = smul.u32 16, %s21
      %p205 = scmp.lt.s32.totalorder %s204, 15
      %s206 = scalar_select %p205, %s204, 15
      %p207 = scmp.lt.s32.totalorder %s20, 0
      %s208 = scalar_select %p207, %s20, 0
      %s209 = sadd.s32 %s208, %s206
      %s210 = smul.addr %s209, 4
      %s211 = scalar_lea.vmem %s1, %s210
      %p212 = pneg %p84
      %p213 = pneg %p81
      %p214 = scmp.lt.s32.totalorder %s20, 0
      %s215 = scalar_select %p214, %s20, 0
      %s216 = scalar_lea.vmem %s2, %s215
      %p217 = pneg %p110
      %p218 = pneg %p107
      %p219 = pneg %p138
      %p220 = pneg %p135
      %s221 = smul.u32 32, %s19
      %p222 = scmp.lt.s32.totalorder %s221, 63
      %s223 = scalar_select %p222, %s221, 63
      %p224 = scmp.lt.s32.totalorder %s20, 0
      %s225 = scalar_select %p224, %s20, 0
      %s226 = sadd.s32 %s225, %s223
      %s227 = smul.addr %s226, 8
      %s228 = scalar_lea.vmem %s3, %s227
      %s229 = smul.u32 32, %s19
      %p230 = scmp.lt.s32.totalorder %s229, 63
      %s231 = scalar_select %p230, %s229, 63
      %p232 = scmp.lt.s32.totalorder %s21, 0
      %s233 = scalar_select %p232, %s21, 0
      %s234 = sadd.s32 %s233, %s231
      %s235 = smul.addr %s234, 4
      %s236 = scalar_lea.vmem %s0, %s235
      %s237 = smul.u32 32, %s19
      %s238 = smul.u32 16, %s21
      %p239 = scmp.lt.s32.totalorder %s238, 15
      %s240 = scalar_select %p239, %s238, 15
      %p241 = scmp.lt.s32.totalorder %s20, 0
      %s242 = scalar_select %p241, %s20, 0
      %s243 = sadd.s32 %s242, %s240
      %s244 = smul.addr %s243, 4
      %s245 = scalar_lea.vmem %s1, %s244
      %s246 = smul.u32 16, %s21
      %p247 = scmp.lt.s32.totalorder %s20, 0
      %s248 = scalar_select %p247, %s20, 0
      %s249 = scalar_lea.vmem %s2, %s248
      %s250 = smul.u32 32, %s19
      %p251 = scmp.lt.s32.totalorder %s250, 63
      %s252 = scalar_select %p251, %s250, 63
      %p253 = scmp.lt.s32.totalorder %s20, 0
      %s254 = scalar_select %p253, %s20, 0
      %s255 = sadd.s32 %s254, %s252
      %s256 = smul.addr %s255, 8
      %s257 = scalar_lea.vmem %s3, %s256
      %s258 = smul.u32 32, %s19
      %p259 = scmp.eq.s32.totalorder %s21, 0
      // Predicated region
      $region33: #{upsample_forward.3} parent=31 // pred_check
        %p260 = pneg %p259
      $region34: #{upsample_forward.3} parent=31 // pred_check_branch
        %262 = sbr.rel (%p260) target = $region36
      $region35: #{upsample_forward.3} parent=31 // pred_region
        %263 = vst [vmem:[#allocation2] sm:$0xff] 0.0
        %264 = vst [vmem:[#allocation2 + $0x8] sm:$0xff] 0.0
        %265 = vst [vmem:[#allocation2 + $0x10] sm:$0xff] 0.0
        %266 = vst [vmem:[#allocation2 + $0x18] sm:$0xff] 0.0
        %267 = vst [vmem:[#allocation2 + $0x20] sm:$0xff] 0.0
        %268 = vst [vmem:[#allocation2 + $0x28] sm:$0xff] 0.0
        %269 = vst [vmem:[#allocation2 + $0x30] sm:$0xff] 0.0
        %270 = vst [vmem:[#allocation2 + $0x38] sm:$0xff] 0.0
        %271 = vst [vmem:[#allocation2 + $0x40] sm:$0xff] 0.0
        %272 = vst [vmem:[#allocation2 + $0x48] sm:$0xff] 0.0
        %273 = vst [vmem:[#allocation2 + $0x50] sm:$0xff] 0.0
        %274 = vst [vmem:[#allocation2 + $0x58] sm:$0xff] 0.0
        %275 = vst [vmem:[#allocation2 + $0x60] sm:$0xff] 0.0
        %276 = vst [vmem:[#allocation2 + $0x68] sm:$0xff] 0.0
        %277 = vst [vmem:[#allocation2 + $0x70] sm:$0xff] 0.0
        %278 = vst [vmem:[#allocation2 + $0x78] sm:$0xff] 0.0
        %279 = vst [vmem:[#allocation2 + $0x80] sm:$0xff] 0.0
        %280 = vst [vmem:[#allocation2 + $0x88] sm:$0xff] 0.0
        %281 = vst [vmem:[#allocation2 + $0x90] sm:$0xff] 0.0
        %282 = vst [vmem:[#allocation2 + $0x98] sm:$0xff] 0.0
        %283 = vst [vmem:[#allocation2 + $0xa0] sm:$0xff] 0.0
        %284 = vst [vmem:[#allocation2 + $0xa8] sm:$0xff] 0.0
        %285 = vst [vmem:[#allocation2 + $0xb0] sm:$0xff] 0.0
        %286 = vst [vmem:[#allocation2 + $0xb8] sm:$0xff] 0.0
        %287 = vst [vmem:[#allocation2 + $0xc0] sm:$0xff] 0.0
        %288 = vst [vmem:[#allocation2 + $0xc8] sm:$0xff] 0.0
        %289 = vst [vmem:[#allocation2 + $0xd0] sm:$0xff] 0.0
        %290 = vst [vmem:[#allocation2 + $0xd8] sm:$0xff] 0.0
        %291 = vst [vmem:[#allocation2 + $0xe0] sm:$0xff] 0.0
        %292 = vst [vmem:[#allocation2 + $0xe8] sm:$0xff] 0.0
        %293 = vst [vmem:[#allocation2 + $0xf0] sm:$0xff] 0.0
        %294 = vst [vmem:[#allocation2 + $0xf8] sm:$0xff] 0.0
      $region36: #{upsample_forward.3} parent=31 // pred_fallthru
        _
      %v295 = vld [vmem:[#allocation2] sm:$0xff]
      %v296 = vld [vmem:[#allocation2 + $0x8] sm:$0xff]
      %v297 = vld [vmem:[#allocation2 + $0x10] sm:$0xff]
      %v298 = vld [vmem:[#allocation2 + $0x18] sm:$0xff]
      %v299 = vld [vmem:[#allocation2 + $0x20] sm:$0xff]
      %v300 = vld [vmem:[#allocation2 + $0x28] sm:$0xff]
      %v301 = vld [vmem:[#allocation2 + $0x30] sm:$0xff]
      %v302 = vld [vmem:[#allocation2 + $0x38] sm:$0xff]
      %v303 = vld [vmem:[#allocation2 + $0x40] sm:$0xff]
      %v304 = vld [vmem:[#allocation2 + $0x48] sm:$0xff]
      %v305 = vld [vmem:[#allocation2 + $0x50] sm:$0xff]
      %v306 = vld [vmem:[#allocation2 + $0x58] sm:$0xff]
      %v307 = vld [vmem:[#allocation2 + $0x60] sm:$0xff]
      %v308 = vld [vmem:[#allocation2 + $0x68] sm:$0xff]
      %v309 = vld [vmem:[#allocation2 + $0x70] sm:$0xff]
      %v310 = vld [vmem:[#allocation2 + $0x78] sm:$0xff]
      %v311 = vld [vmem:[#allocation2 + $0x80] sm:$0xff]
      %v312 = vld [vmem:[#allocation2 + $0x88] sm:$0xff]
      %v313 = vld [vmem:[#allocation2 + $0x90] sm:$0xff]
      %v314 = vld [vmem:[#allocation2 + $0x98] sm:$0xff]
      %v315 = vld [vmem:[#allocation2 + $0xa0] sm:$0xff]
      %v316 = vld [vmem:[#allocation2 + $0xa8] sm:$0xff]
      %v317 = vld [vmem:[#allocation2 + $0xb0] sm:$0xff]
      %v318 = vld [vmem:[#allocation2 + $0xb8] sm:$0xff]
      %v319 = vld [vmem:[#allocation2 + $0xc0] sm:$0xff]
      %v320 = vld [vmem:[#allocation2 + $0xc8] sm:$0xff]
      %v321 = vld [vmem:[#allocation2 + $0xd0] sm:$0xff]
      %v322 = vld [vmem:[#allocation2 + $0xd8] sm:$0xff]
      %v323 = vld [vmem:[#allocation2 + $0xe0] sm:$0xff]
      %v324 = vld [vmem:[#allocation2 + $0xe8] sm:$0xff]
      %v325 = vld [vmem:[#allocation2 + $0xf0] sm:$0xff]
      %v326 = vld [vmem:[#allocation2 + $0xf8] sm:$0xff]
      %v327 = vld [vmem:[%s236] sm:$0xf]
      %v328 = vld [vmem:[%s236 + $0x4] sm:$0xf]
      %v329 = vld [vmem:[%s236 + $0x8] sm:$0xf]
      %v330 = vld [vmem:[%s236 + $0xc] sm:$0xf]
      %v331 = vld [vmem:[%s236 + $0x10] sm:$0xf]
      %v332 = vld [vmem:[%s236 + $0x14] sm:$0xf]
      %v333 = vld [vmem:[%s236 + $0x18] sm:$0xf]
      %v334 = vld [vmem:[%s236 + $0x1c] sm:$0xf]
      %v335 = vld [vmem:[%s236 + $0x20] sm:$0xf]
      %v336 = vld [vmem:[%s236 + $0x24] sm:$0xf]
      %v337 = vld [vmem:[%s236 + $0x28] sm:$0xf]
      %v338 = vld [vmem:[%s236 + $0x2c] sm:$0xf]
      %v339 = vld [vmem:[%s236 + $0x30] sm:$0xf]
      %v340 = vld [vmem:[%s236 + $0x34] sm:$0xf]
      %v341 = vld [vmem:[%s236 + $0x38] sm:$0xf]
      %v342 = vld [vmem:[%s236 + $0x3c] sm:$0xf]
      %v343 = vld [vmem:[%s236 + $0x40] sm:$0xf]
      %v344 = vld [vmem:[%s236 + $0x44] sm:$0xf]
      %v345 = vld [vmem:[%s236 + $0x48] sm:$0xf]
      %v346 = vld [vmem:[%s236 + $0x4c] sm:$0xf]
      %v347 = vld [vmem:[%s236 + $0x50] sm:$0xf]
      %v348 = vld [vmem:[%s236 + $0x54] sm:$0xf]
      %v349 = vld [vmem:[%s236 + $0x58] sm:$0xf]
      %v350 = vld [vmem:[%s236 + $0x5c] sm:$0xf]
      %v351 = vld [vmem:[%s236 + $0x60] sm:$0xf]
      %v352 = vld [vmem:[%s236 + $0x64] sm:$0xf]
      %v353 = vld [vmem:[%s236 + $0x68] sm:$0xf]
      %v354 = vld [vmem:[%s236 + $0x6c] sm:$0xf]
      %v355 = vld [vmem:[%s236 + $0x70] sm:$0xf]
      %v356 = vld [vmem:[%s236 + $0x74] sm:$0xf]
      %v357 = vld [vmem:[%s236 + $0x78] sm:$0xf]
      %v358 = vld [vmem:[%s236 + $0x7c] sm:$0xf]
      %v359 = vld [vmem:[%s245] sm:$0xf]
      %v360 = vld [vmem:[%s245 + $0x4] sm:$0xf]
      %v361 = vld [vmem:[%s245 + $0x8] sm:$0xf]
      %v362 = vld [vmem:[%s245 + $0xc] sm:$0xf]
      %v363 = vld [vmem:[%s245 + $0x10] sm:$0xf]
      %v364 = vld [vmem:[%s245 + $0x14] sm:$0xf]
      %v365 = vld [vmem:[%s245 + $0x18] sm:$0xf]
      %v366 = vld [vmem:[%s245 + $0x1c] sm:$0xf]
      %v367 = vld [vmem:[%s245 + $0x20] sm:$0xf]
      %v368 = vld [vmem:[%s245 + $0x24] sm:$0xf]
      %v369 = vld [vmem:[%s245 + $0x28] sm:$0xf]
      %v370 = vld [vmem:[%s245 + $0x2c] sm:$0xf]
      %v371 = vld [vmem:[%s245 + $0x30] sm:$0xf]
      %v372 = vld [vmem:[%s245 + $0x34] sm:$0xf]
      %v373 = vld [vmem:[%s245 + $0x38] sm:$0xf]
      %v374 = vld [vmem:[%s245 + $0x3c] sm:$0xf]
      %v407 = vunpack.c.l.b16 %v327
      %v408 = vunpack.c.l.b16 %v328
      %v409 = vunpack.c.l.b16 %v329
      %v410 = vunpack.c.l.b16 %v330
      %v411 = vunpack.c.l.b16 %v331
      %v412 = vunpack.c.l.b16 %v332
      %v413 = vunpack.c.l.b16 %v333
      %v414 = vunpack.c.l.b16 %v334
      %v415 = vunpack.c.l.b16 %v335
      %v416 = vunpack.c.l.b16 %v336
      %v417 = vunpack.c.l.b16 %v337
      %v418 = vunpack.c.l.b16 %v338
      %v419 = vunpack.c.l.b16 %v339
      %v420 = vunpack.c.l.b16 %v340
      %v421 = vunpack.c.l.b16 %v341
      %v422 = vunpack.c.l.b16 %v342
      %v423 = vunpack.c.l.b16 %v343
      %v424 = vunpack.c.l.b16 %v344
      %v425 = vunpack.c.l.b16 %v345
      %v426 = vunpack.c.l.b16 %v346
      %v427 = vunpack.c.l.b16 %v347
      %v428 = vunpack.c.l.b16 %v348
      %v429 = vunpack.c.l.b16 %v349
      %v430 = vunpack.c.l.b16 %v350
      %v431 = vunpack.c.l.b16 %v351
      %v432 = vunpack.c.l.b16 %v352
      %v433 = vunpack.c.l.b16 %v353
      %v434 = vunpack.c.l.b16 %v354
      %v435 = vunpack.c.l.b16 %v355
      %v436 = vunpack.c.l.b16 %v356
      %v437 = vunpack.c.l.b16 %v357
      %v438 = vunpack.c.l.b16 %v358
      %v439 = vpack.c.b16 %v408, %v407
      %v440 = vpack.c.b16 %v410, %v409
      %v441 = vpack.c.b16 %v412, %v411
      %v442 = vpack.c.b16 %v414, %v413
      %v443 = vpack.c.b16 %v416, %v415
      %v444 = vpack.c.b16 %v418, %v417
      %v445 = vpack.c.b16 %v420, %v419
      %v446 = vpack.c.b16 %v422, %v421
      %v447 = vpack.c.b16 %v424, %v423
      %v448 = vpack.c.b16 %v426, %v425
      %v449 = vpack.c.b16 %v428, %v427
      %v450 = vpack.c.b16 %v430, %v429
      %v451 = vpack.c.b16 %v432, %v431
      %v452 = vpack.c.b16 %v434, %v433
      %v453 = vpack.c.b16 %v436, %v435
      %v454 = vpack.c.b16 %v438, %v437
      %v487 = vunpack.c.l.b16 %v359
      %v488 = vunpack.c.l.b16 %v360
      %v489 = vunpack.c.l.b16 %v361
      %v490 = vunpack.c.l.b16 %v362
      %v491 = vunpack.c.l.b16 %v363
      %v492 = vunpack.c.l.b16 %v364
      %v493 = vunpack.c.l.b16 %v365
      %v494 = vunpack.c.l.b16 %v366
      %v495 = vunpack.c.l.b16 %v367
      %v496 = vunpack.c.l.b16 %v368
      %v497 = vunpack.c.l.b16 %v369
      %v498 = vunpack.c.l.b16 %v370
      %v499 = vunpack.c.l.b16 %v371
      %v500 = vunpack.c.l.b16 %v372
      %v501 = vunpack.c.l.b16 %v373
      %v502 = vunpack.c.l.b16 %v374
      %v503 = vpack.c.b16 %v488, %v487
      %v504 = vpack.c.b16 %v490, %v489
      %v505 = vpack.c.b16 %v492, %v491
      %v506 = vpack.c.b16 %v494, %v493
      %v507 = vpack.c.b16 %v496, %v495
      %v508 = vpack.c.b16 %v498, %v497
      %v509 = vpack.c.b16 %v500, %v499
      %v510 = vpack.c.b16 %v502, %v501
      %519 = vmatpush.bf16.msra.mxu0 %v510
      %520 = vmatpush.bf16.msra.mxu0 %v509
      %521 = vmatpush.bf16.msra.mxu0 %v508
      %522 = vmatpush.bf16.msra.mxu0 %v507
      %523 = vmatpush.bf16.msra.mxu0 %v506
      %524 = vmatpush.bf16.msra.mxu0 %v505
      %525 = vmatpush.bf16.msra.mxu0 %v504
      %526 = vmatpush.bf16.msra.mxu0 %v503
      %527 = vmatmul.bf16.gmra.mxu0 %v439
      %v528 = vpop.f32.mrf.mxu0
      %v529 = vadd.f32 0.0, %v528
      %v530 = vpop.f32.mrf.mxu0
      %v531 = vadd.f32 0.0, %v530
      %532 = vmatmul.bf16.gmra.mxu0 %v440
      %v533 = vpop.f32.mrf.mxu0
      %v534 = vadd.f32 0.0, %v533
      %v535 = vpop.f32.mrf.mxu0
      %v536 = vadd.f32 0.0, %v535
      %537 = vmatmul.bf16.gmra.mxu0 %v441
      %v538 = vpop.f32.mrf.mxu0
      %v539 = vadd.f32 0.0, %v538
      %v540 = vpop.f32.mrf.mxu0
      %v541 = vadd.f32 0.0, %v540
      %542 = vmatmul.bf16.gmra.mxu0 %v442
      %v543 = vpop.f32.mrf.mxu0
      %v544 = vadd.f32 0.0, %v543
      %v545 = vpop.f32.mrf.mxu0
      %v546 = vadd.f32 0.0, %v545
      %547 = vmatmul.bf16.gmra.mxu0 %v443
      %v548 = vpop.f32.mrf.mxu0
      %v549 = vadd.f32 0.0, %v548
      %v550 = vpop.f32.mrf.mxu0
      %v551 = vadd.f32 0.0, %v550
      %552 = vmatmul.bf16.gmra.mxu0 %v444
      %v553 = vpop.f32.mrf.mxu0
      %v554 = vadd.f32 0.0, %v553
      %v555 = vpop.f32.mrf.mxu0
      %v556 = vadd.f32 0.0, %v555
      %557 = vmatmul.bf16.gmra.mxu0 %v445
      %v558 = vpop.f32.mrf.mxu0
      %v559 = vadd.f32 0.0, %v558
      %v560 = vpop.f32.mrf.mxu0
      %v561 = vadd.f32 0.0, %v560
      %562 = vmatmul.bf16.gmra.mxu0 %v446
      %v563 = vpop.f32.mrf.mxu0
      %v564 = vadd.f32 0.0, %v563
      %v565 = vpop.f32.mrf.mxu0
      %v566 = vadd.f32 0.0, %v565
      %567 = vmatmul.bf16.gmra.mxu0 %v447
      %v568 = vpop.f32.mrf.mxu0
      %v569 = vadd.f32 0.0, %v568
      %v570 = vpop.f32.mrf.mxu0
      %v571 = vadd.f32 0.0, %v570
      %572 = vmatmul.bf16.gmra.mxu0 %v448
      %v573 = vpop.f32.mrf.mxu0
      %v574 = vadd.f32 0.0, %v573
      %v575 = vpop.f32.mrf.mxu0
      %v576 = vadd.f32 0.0, %v575
      %577 = vmatmul.bf16.gmra.mxu0 %v449
      %v578 = vpop.f32.mrf.mxu0
      %v579 = vadd.f32 0.0, %v578
      %v580 = vpop.f32.mrf.mxu0
      %v581 = vadd.f32 0.0, %v580
      %582 = vmatmul.bf16.gmra.mxu0 %v450
      %v583 = vpop.f32.mrf.mxu0
      %v584 = vadd.f32 0.0, %v583
      %v585 = vpop.f32.mrf.mxu0
      %v586 = vadd.f32 0.0, %v585
      %587 = vmatmul.bf16.gmra.mxu0 %v451
      %v588 = vpop.f32.mrf.mxu0
      %v589 = vadd.f32 0.0, %v588
      %v590 = vpop.f32.mrf.mxu0
      %v591 = vadd.f32 0.0, %v590
      %592 = vmatmul.bf16.gmra.mxu0 %v452
      %v593 = vpop.f32.mrf.mxu0
      %v594 = vadd.f32 0.0, %v593
      %v595 = vpop.f32.mrf.mxu0
      %v596 = vadd.f32 0.0, %v595
      %597 = vmatmul.bf16.gmra.mxu0 %v453
      %v598 = vpop.f32.mrf.mxu0
      %v599 = vadd.f32 0.0, %v598
      %v600 = vpop.f32.mrf.mxu0
      %v601 = vadd.f32 0.0, %v600
      %602 = vmatmul.bf16.gmra.mxu0 %v454
      %v603 = vpop.f32.mrf.mxu0
      %v604 = vadd.f32 0.0, %v603
      %v605 = vpop.f32.mrf.mxu0
      %v606 = vadd.f32 0.0, %v605
      %607 = vdwg.mxu0
      %v608 = vadd.f32 %v295, %v529
      %v609 = vadd.f32 %v296, %v531
      %v610 = vadd.f32 %v297, %v534
      %v611 = vadd.f32 %v298, %v536
      %v612 = vadd.f32 %v299, %v539
      %v613 = vadd.f32 %v300, %v541
      %v614 = vadd.f32 %v301, %v544
      %v615 = vadd.f32 %v302, %v546
      %v616 = vadd.f32 %v303, %v549
      %v617 = vadd.f32 %v304, %v551
      %v618 = vadd.f32 %v305, %v554
      %v619 = vadd.f32 %v306, %v556
      %v620 = vadd.f32 %v307, %v559
      %v621 = vadd.f32 %v308, %v561
      %v622 = vadd.f32 %v309, %v564
      %v623 = vadd.f32 %v310, %v566
      %v624 = vadd.f32 %v311, %v569
      %v625 = vadd.f32 %v312, %v571
      %v626 = vadd.f32 %v313, %v574
      %v627 = vadd.f32 %v314, %v576
      %v628 = vadd.f32 %v315, %v579
      %v629 = vadd.f32 %v316, %v581
      %v630 = vadd.f32 %v317, %v584
      %v631 = vadd.f32 %v318, %v586
      %v632 = vadd.f32 %v319, %v589
      %v633 = vadd.f32 %v320, %v591
      %v634 = vadd.f32 %v321, %v594
      %v635 = vadd.f32 %v322, %v596
      %v636 = vadd.f32 %v323, %v599
      %v637 = vadd.f32 %v324, %v601
      %v638 = vadd.f32 %v325, %v604
      %v639 = vadd.f32 %v326, %v606
      %640 = vst [vmem:[#allocation2] sm:$0xff] %v608
      %641 = vst [vmem:[#allocation2 + $0x8] sm:$0xff] %v609
      %642 = vst [vmem:[#allocation2 + $0x10] sm:$0xff] %v610
      %643 = vst [vmem:[#allocation2 + $0x18] sm:$0xff] %v611
      %644 = vst [vmem:[#allocation2 + $0x20] sm:$0xff] %v612
      %645 = vst [vmem:[#allocation2 + $0x28] sm:$0xff] %v613
      %646 = vst [vmem:[#allocation2 + $0x30] sm:$0xff] %v614
      %647 = vst [vmem:[#allocation2 + $0x38] sm:$0xff] %v615
      %648 = vst [vmem:[#allocation2 + $0x40] sm:$0xff] %v616
      %649 = vst [vmem:[#allocation2 + $0x48] sm:$0xff] %v617
      %650 = vst [vmem:[#allocation2 + $0x50] sm:$0xff] %v618
      %651 = vst [vmem:[#allocation2 + $0x58] sm:$0xff] %v619
      %652 = vst [vmem:[#allocation2 + $0x60] sm:$0xff] %v620
      %653 = vst [vmem:[#allocation2 + $0x68] sm:$0xff] %v621
      %654 = vst [vmem:[#allocation2 + $0x70] sm:$0xff] %v622
      %655 = vst [vmem:[#allocation2 + $0x78] sm:$0xff] %v623
      %656 = vst [vmem:[#allocation2 + $0x80] sm:$0xff] %v624
      %657 = vst [vmem:[#allocation2 + $0x88] sm:$0xff] %v625
      %658 = vst [vmem:[#allocation2 + $0x90] sm:$0xff] %v626
      %659 = vst [vmem:[#allocation2 + $0x98] sm:$0xff] %v627
      %660 = vst [vmem:[#allocation2 + $0xa0] sm:$0xff] %v628
      %661 = vst [vmem:[#allocation2 + $0xa8] sm:$0xff] %v629
      %662 = vst [vmem:[#allocation2 + $0xb0] sm:$0xff] %v630
      %663 = vst [vmem:[#allocation2 + $0xb8] sm:$0xff] %v631
      %664 = vst [vmem:[#allocation2 + $0xc0] sm:$0xff] %v632
      %665 = vst [vmem:[#allocation2 + $0xc8] sm:$0xff] %v633
      %666 = vst [vmem:[#allocation2 + $0xd0] sm:$0xff] %v634
      %667 = vst [vmem:[#allocation2 + $0xd8] sm:$0xff] %v635
      %668 = vst [vmem:[#allocation2 + $0xe0] sm:$0xff] %v636
      %669 = vst [vmem:[#allocation2 + $0xe8] sm:$0xff] %v637
      %670 = vst [vmem:[#allocation2 + $0xf0] sm:$0xff] %v638
      %671 = vst [vmem:[#allocation2 + $0xf8] sm:$0xff] %v639
      // Predicated region
      $region37: #{upsample_forward.3} parent=31 // pred_check
        %p672 = pneg %p259
      $region38: #{upsample_forward.3} parent=31 // pred_check_branch
        %674 = sbr.rel (%p672) target = $region40
      $region39: #{upsample_forward.3} parent=31 // pred_region
        %v675 = vld [vmem:[#allocation2] sm:$0xff]
        %v676 = vld [vmem:[#allocation2 + $0x8] sm:$0xff]
        %v677 = vld [vmem:[#allocation2 + $0x10] sm:$0xff]
        %v678 = vld [vmem:[#allocation2 + $0x18] sm:$0xff]
        %v679 = vld [vmem:[#allocation2 + $0x20] sm:$0xff]
        %v680 = vld [vmem:[#allocation2 + $0x28] sm:$0xff]
        %v681 = vld [vmem:[#allocation2 + $0x30] sm:$0xff]
        %v682 = vld [vmem:[#allocation2 + $0x38] sm:$0xff]
        %v683 = vld [vmem:[#allocation2 + $0x40] sm:$0xff]
        %v684 = vld [vmem:[#allocation2 + $0x48] sm:$0xff]
        %v685 = vld [vmem:[#allocation2 + $0x50] sm:$0xff]
        %v686 = vld [vmem:[#allocation2 + $0x58] sm:$0xff]
        %v687 = vld [vmem:[#allocation2 + $0x60] sm:$0xff]
        %v688 = vld [vmem:[#allocation2 + $0x68] sm:$0xff]
        %v689 = vld [vmem:[#allocation2 + $0x70] sm:$0xff]
        %v690 = vld [vmem:[#allocation2 + $0x78] sm:$0xff]
        %v691 = vld [vmem:[#allocation2 + $0x80] sm:$0xff]
        %v692 = vld [vmem:[#allocation2 + $0x88] sm:$0xff]
        %v693 = vld [vmem:[#allocation2 + $0x90] sm:$0xff]
        %v694 = vld [vmem:[#allocation2 + $0x98] sm:$0xff]
        %v695 = vld [vmem:[#allocation2 + $0xa0] sm:$0xff]
        %v696 = vld [vmem:[#allocation2 + $0xa8] sm:$0xff]
        %v697 = vld [vmem:[#allocation2 + $0xb0] sm:$0xff]
        %v698 = vld [vmem:[#allocation2 + $0xb8] sm:$0xff]
        %v699 = vld [vmem:[#allocation2 + $0xc0] sm:$0xff]
        %v700 = vld [vmem:[#allocation2 + $0xc8] sm:$0xff]
        %v701 = vld [vmem:[#allocation2 + $0xd0] sm:$0xff]
        %v702 = vld [vmem:[#allocation2 + $0xd8] sm:$0xff]
        %v703 = vld [vmem:[#allocation2 + $0xe0] sm:$0xff]
        %v704 = vld [vmem:[#allocation2 + $0xe8] sm:$0xff]
        %v705 = vld [vmem:[#allocation2 + $0xf0] sm:$0xff]
        %v706 = vld [vmem:[#allocation2 + $0xf8] sm:$0xff]
        %v707 = vld [vmem:[%s249] sm:$0x1]
        %v709 = vperm.slane %v707, 0
        %v711 = vadd.f32 %v675, %v709
        %v712 = vadd.f32 %v676, %v709
        %v713 = vadd.f32 %v677, %v709
        %v714 = vadd.f32 %v678, %v709
        %v715 = vadd.f32 %v679, %v709
        %v716 = vadd.f32 %v680, %v709
        %v717 = vadd.f32 %v681, %v709
        %v718 = vadd.f32 %v682, %v709
        %v719 = vadd.f32 %v683, %v709
        %v720 = vadd.f32 %v684, %v709
        %v721 = vadd.f32 %v685, %v709
        %v722 = vadd.f32 %v686, %v709
        %v723 = vadd.f32 %v687, %v709
        %v724 = vadd.f32 %v688, %v709
        %v725 = vadd.f32 %v689, %v709
        %v726 = vadd.f32 %v690, %v709
        %v727 = vadd.f32 %v691, %v709
        %v728 = vadd.f32 %v692, %v709
        %v729 = vadd.f32 %v693, %v709
        %v730 = vadd.f32 %v694, %v709
        %v731 = vadd.f32 %v695, %v709
        %v732 = vadd.f32 %v696, %v709
        %v733 = vadd.f32 %v697, %v709
        %v734 = vadd.f32 %v698, %v709
        %v735 = vadd.f32 %v699, %v709
        %v736 = vadd.f32 %v700, %v709
        %v737 = vadd.f32 %v701, %v709
        %v738 = vadd.f32 %v702, %v709
        %v739 = vadd.f32 %v703, %v709
        %v740 = vadd.f32 %v704, %v709
        %v741 = vadd.f32 %v705, %v709
        %v742 = vadd.f32 %v706, %v709
        %vm743 = vcmp.ge.f32.partialorder %v711, 0.0
        %vm744 = vcmp.ge.f32.partialorder %v712, 0.0
        %vm745 = vcmp.ge.f32.partialorder %v713, 0.0
        %vm746 = vcmp.ge.f32.partialorder %v714, 0.0
        %vm747 = vcmp.ge.f32.partialorder %v715, 0.0
        %vm748 = vcmp.ge.f32.partialorder %v716, 0.0
        %vm749 = vcmp.ge.f32.partialorder %v717, 0.0
        %vm750 = vcmp.ge.f32.partialorder %v718, 0.0
        %vm751 = vcmp.ge.f32.partialorder %v719, 0.0
        %vm752 = vcmp.ge.f32.partialorder %v720, 0.0
        %vm753 = vcmp.ge.f32.partialorder %v721, 0.0
        %vm754 = vcmp.ge.f32.partialorder %v722, 0.0
        %vm755 = vcmp.ge.f32.partialorder %v723, 0.0
        %vm756 = vcmp.ge.f32.partialorder %v724, 0.0
        %vm757 = vcmp.ge.f32.partialorder %v725, 0.0
        %vm758 = vcmp.ge.f32.partialorder %v726, 0.0
        %vm759 = vcmp.ge.f32.partialorder %v727, 0.0
        %vm760 = vcmp.ge.f32.partialorder %v728, 0.0
        %vm761 = vcmp.ge.f32.partialorder %v729, 0.0
        %vm762 = vcmp.ge.f32.partialorder %v730, 0.0
        %vm763 = vcmp.ge.f32.partialorder %v731, 0.0
        %vm764 = vcmp.ge.f32.partialorder %v732, 0.0
        %vm765 = vcmp.ge.f32.partialorder %v733, 0.0
        %vm766 = vcmp.ge.f32.partialorder %v734, 0.0
        %vm767 = vcmp.ge.f32.partialorder %v735, 0.0
        %vm768 = vcmp.ge.f32.partialorder %v736, 0.0
        %vm769 = vcmp.ge.f32.partialorder %v737, 0.0
        %vm770 = vcmp.ge.f32.partialorder %v738, 0.0
        %vm771 = vcmp.ge.f32.partialorder %v739, 0.0
        %vm772 = vcmp.ge.f32.partialorder %v740, 0.0
        %vm773 = vcmp.ge.f32.partialorder %v741, 0.0
        %vm774 = vcmp.ge.f32.partialorder %v742, 0.0
        %v775 = vmul.f32 %v711, 0.01
        %v776 = vmul.f32 %v712, 0.01
        %v777 = vmul.f32 %v713, 0.01
        %v778 = vmul.f32 %v714, 0.01
        %v779 = vmul.f32 %v715, 0.01
        %v780 = vmul.f32 %v716, 0.01
        %v781 = vmul.f32 %v717, 0.01
        %v782 = vmul.f32 %v718, 0.01
        %v783 = vmul.f32 %v719, 0.01
        %v784 = vmul.f32 %v720, 0.01
        %v785 = vmul.f32 %v721, 0.01
        %v786 = vmul.f32 %v722, 0.01
        %v787 = vmul.f32 %v723, 0.01
        %v788 = vmul.f32 %v724, 0.01
        %v789 = vmul.f32 %v725, 0.01
        %v790 = vmul.f32 %v726, 0.01
        %v791 = vmul.f32 %v727, 0.01
        %v792 = vmul.f32 %v728, 0.01
        %v793 = vmul.f32 %v729, 0.01
        %v794 = vmul.f32 %v730, 0.01
        %v795 = vmul.f32 %v731, 0.01
        %v796 = vmul.f32 %v732, 0.01
        %v797 = vmul.f32 %v733, 0.01
        %v798 = vmul.f32 %v734, 0.01
        %v799 = vmul.f32 %v735, 0.01
        %v800 = vmul.f32 %v736, 0.01
        %v801 = vmul.f32 %v737, 0.01
        %v802 = vmul.f32 %v738, 0.01
        %v803 = vmul.f32 %v739, 0.01
        %v804 = vmul.f32 %v740, 0.01
        %v805 = vmul.f32 %v741, 0.01
        %v806 = vmul.f32 %v742, 0.01
        %v807 = vsel %vm743, %v711, %v775
        %v808 = vsel %vm744, %v712, %v776
        %v809 = vsel %vm745, %v713, %v777
        %v810 = vsel %vm746, %v714, %v778
        %v811 = vsel %vm747, %v715, %v779
        %v812 = vsel %vm748, %v716, %v780
        %v813 = vsel %vm749, %v717, %v781
        %v814 = vsel %vm750, %v718, %v782
        %v815 = vsel %vm751, %v719, %v783
        %v816 = vsel %vm752, %v720, %v784
        %v817 = vsel %vm753, %v721, %v785
        %v818 = vsel %vm754, %v722, %v786
        %v819 = vsel %vm755, %v723, %v787
        %v820 = vsel %vm756, %v724, %v788
        %v821 = vsel %vm757, %v725, %v789
        %v822 = vsel %vm758, %v726, %v790
        %v823 = vsel %vm759, %v727, %v791
        %v824 = vsel %vm760, %v728, %v792
        %v825 = vsel %vm761, %v729, %v793
        %v826 = vsel %vm762, %v730, %v794
        %v827 = vsel %vm763, %v731, %v795
        %v828 = vsel %vm764, %v732, %v796
        %v829 = vsel %vm765, %v733, %v797
        %v830 = vsel %vm766, %v734, %v798
        %v831 = vsel %vm767, %v735, %v799
        %v832 = vsel %vm768, %v736, %v800
        %v833 = vsel %vm769, %v737, %v801
        %v834 = vsel %vm770, %v738, %v802
        %v835 = vsel %vm771, %v739, %v803
        %v836 = vsel %vm772, %v740, %v804
        %v837 = vsel %vm773, %v741, %v805
        %v838 = vsel %vm774, %v742, %v806
        %839 = vst [vmem:[%s257] sm:$0xff] %v807
        %840 = vst [vmem:[%s257 + $0x8] sm:$0xff] %v808
        %841 = vst [vmem:[%s257 + $0x10] sm:$0xff] %v809
        %842 = vst [vmem:[%s257 + $0x18] sm:$0xff] %v810
        %843 = vst [vmem:[%s257 + $0x20] sm:$0xff] %v811
        %844 = vst [vmem:[%s257 + $0x28] sm:$0xff] %v812
        %845 = vst [vmem:[%s257 + $0x30] sm:$0xff] %v813
        %846 = vst [vmem:[%s257 + $0x38] sm:$0xff] %v814
        %847 = vst [vmem:[%s257 + $0x40] sm:$0xff] %v815
        %848 = vst [vmem:[%s257 + $0x48] sm:$0xff] %v816
        %849 = vst [vmem:[%s257 + $0x50] sm:$0xff] %v817
        %850 = vst [vmem:[%s257 + $0x58] sm:$0xff] %v818
        %851 = vst [vmem:[%s257 + $0x60] sm:$0xff] %v819
        %852 = vst [vmem:[%s257 + $0x68] sm:$0xff] %v820
        %853 = vst [vmem:[%s257 + $0x70] sm:$0xff] %v821
        %854 = vst [vmem:[%s257 + $0x78] sm:$0xff] %v822
        %855 = vst [vmem:[%s257 + $0x80] sm:$0xff] %v823
        %856 = vst [vmem:[%s257 + $0x88] sm:$0xff] %v824
        %857 = vst [vmem:[%s257 + $0x90] sm:$0xff] %v825
        %858 = vst [vmem:[%s257 + $0x98] sm:$0xff] %v826
        %859 = vst [vmem:[%s257 + $0xa0] sm:$0xff] %v827
        %860 = vst [vmem:[%s257 + $0xa8] sm:$0xff] %v828
        %861 = vst [vmem:[%s257 + $0xb0] sm:$0xff] %v829
        %862 = vst [vmem:[%s257 + $0xb8] sm:$0xff] %v830
        %863 = vst [vmem:[%s257 + $0xc0] sm:$0xff] %v831
        %864 = vst [vmem:[%s257 + $0xc8] sm:$0xff] %v832
        %865 = vst [vmem:[%s257 + $0xd0] sm:$0xff] %v833
        %866 = vst [vmem:[%s257 + $0xd8] sm:$0xff] %v834
        %867 = vst [vmem:[%s257 + $0xe0] sm:$0xff] %v835
        %868 = vst [vmem:[%s257 + $0xe8] sm:$0xff] %v836
        %869 = vst [vmem:[%s257 + $0xf0] sm:$0xff] %v837
        %870 = vst [vmem:[%s257 + $0xf8] sm:$0xff] %v838
      $region40: #{upsample_forward.3} parent=31 // pred_fallthru
        _
      %s871 = smul.u32 32, %s19
      %p872 = scmp.lt.s32.totalorder %s871, 63
      %s873 = scalar_select %p872, %s871, 63
      %p874 = scmp.lt.s32.totalorder %s20, 0
      %s875 = scalar_select %p874, %s20, 0
      %s876 = sadd.s32 %s875, %s873
      %s877 = smul.addr %s876, 8
      %s878 = scalar_lea.vmem %s3, %s877
      // Predicated region
      $region41: #{upsample_forward.3} parent=31 // pred_check
        %p879 = pneg %p135
      $region42: #{upsample_forward.3} parent=31 // pred_check_branch
        %881 = sbr.rel (%p879) target = $region44
      $region43: #{upsample_forward.3} parent=31 // pred_region
        %s882 = smul.u32 32, %s19
      $region44: #{upsample_forward.3} parent=31 // pred_fallthru
        _
    $region32: #{upsample_forward.3} parent=5 // pred_fallthru
      _
    %p883 = scmp.le.s32.totalorder 2, %s9
    // Predicated region
    $region45: #{upsample_forward.3} parent=5 // pred_check
      %p884 = pneg %p883
    $region46: #{upsample_forward.3} parent=5 // pred_check_branch
      %886 = sbr.rel (%p884) target = $region48
    $region47: #{upsample_forward.3} parent=5 // pred_region
      %s887 = ssub.s32 %s9, 2
      // Predicated region
      $region49: #{upsample_forward.3} parent=47 // pred_check
        %p888 = pneg %p141
      $region50: #{upsample_forward.3} parent=47 // pred_check_branch
        %890 = sbr.rel (%p888) target = $region52
      $region51: #{upsample_forward.3} parent=47 // pred_region
        %s891 = smul.u32 32, %s22
        %p892 = scmp.lt.s32.totalorder %s891, 63
        %s893 = scalar_select %p892, %s891, 63
        %p894 = scmp.lt.s32.totalorder %s23, 0
        %s895 = scalar_select %p894, %s23, 0
        %s896 = sadd.s32 %s895, %s893
        %s897 = smul.addr %s896, 8
        %s898 = scalar_lea.vmem %s3, %s897
      $region52: #{upsample_forward.3} parent=47 // pred_fallthru
        _
    $region48: #{upsample_forward.3} parent=5 // pred_fallthru
      _
  $region6: #{upsample_forward.3} parent=0 // loop_footer
    %s13 = sadd.s32 1, %s9
  $region7: #{upsample_forward.3} parent=0 // loop_footer_branch
    %8 = sbr.rel target = $region3
  $region8: #{upsample_forward.3} parent=0 // loop_exit
    _

// kernel: upsample_forward.4
$region0: #{upsample_forward.4}
  #allocation0 [shape = 'u32[]', space=smem, size = 0x4, offset = 0x4, fixed_abs, tag = 'smem constant byte address 0x4 - core index']
  #allocation1 [shape = 'u32[72,128]{1,0:T(1,128)}', space=vmem, size = 0x9000, scoped, tag = 'internal scratch']
  %s0 = inlined_call_operand.vmem [shape: f32[2,1024,8], index: 0, kind: input, shape index: {}]
  %s1 = inlined_call_operand.vmem [shape: f32[2,1,8], index: 1, kind: output, shape index: {0}]
  %s2 = inlined_call_operand.vmem [shape: f32[2,1,8], index: 2, kind: output, shape index: {1}]
  %3 = xla_tuple %s1, %s2
  %s4 = sld [smem:[#allocation0]]
  $region49: #{upsample_forward.4} parent=0
    _
  %s6 = ssub.s32 1, %s4
  %s7 = scalar_select 0, %s6, %s4
  loop: start=0, step=1, limit=6
  $region2: #{upsample_forward.4} parent=0 // loop_pre_header
    _
  $region3: #{upsample_forward.4} parent=0 // loop_header
    %s9 = sphi 0, %s13
    %p10 = scmp.ge.s32.totalorder %s9, 6
    %s16 = sphi 0, %s28
    %s17 = sphi 0, %s24
    %s18 = sphi 0, %s16
    %s19 = sphi 0, %s17
    %s20 = sphi 0, %s18
    %s21 = sphi 0, %s19
    %s33 = sphi 0, %s35
    %s36 = sphi 0, %s33
    %s37 = sphi 0, %s36
    %s53 = sphi 0, %s37
    %s59 = sphi 0, %s61
    %s62 = sphi 0, %s59
    %s63 = sphi 0, %s62
    %s79 = sphi 0, %s63
    %s85 = sphi 0, %s87
    %s88 = sphi 0, %s85
    %s89 = sphi 0, %s88
    %s105 = sphi 0, %s89
  $region4: #{upsample_forward.4} parent=0 // loop_header_branch
    %12 = sbr.rel (%p10) target = $region8
  $region5: #{upsample_forward.4} parent=0 // loop_body
    %s14 = ssub.s32 %s9, 1
    %s15 = ssub.s32 %s9, 2
    %s22 = sadd.s32 1, %s17
    %p23 = scmp.ge.s32.totalorder %s22, 2
    %s24 = scalar_select %p23, 0, %s22
    %s25 = sadd.s32 1, %s16
    %s26 = scalar_select %p23, %s25, %s16
    %p27 = scmp.ge.s32.totalorder %s26, 2
    %s28 = scalar_select %p27, 0, %s26
    %s29 = ssub.s32 %s16, %s28
    %s30 = ssub.s32 %s17, %s24
    %s31 = sor.u32 %s29, %s30
    %p32 = scmp.eq.s32.totalorder %s31, 0
    %s34 = sadd.s32 %s33, 1
    %s35 = scalar_select %p32, %s33, %s34
    %p38 = pneg %p32
    %p39 = scmp.eq.s32.totalorder %s9, 3
    %p40 = por %p38, %p39
    %p41 = scmp.ne.s32.totalorder %s33, %s36
    %p42 = scmp.eq.s32.totalorder %s9, 0
    %p43 = por %p41, %p42
    %p44 = scmp.ne.s32.totalorder %s33, %s36
    %p45 = scmp.eq.s32.totalorder %s14, 3
    %p46 = por %p44, %p45
    %p47 = scmp.ne.s32.totalorder %s36, %s37
    %p48 = scmp.eq.s32.totalorder %s14, 0
    %p49 = por %p47, %p48
    %p50 = scmp.ne.s32.totalorder %s36, %s37
    %p51 = scmp.eq.s32.totalorder %s15, 3
    %p52 = por %p50, %p51
    %p54 = scmp.ne.s32.totalorder %s37, %s53
    %p55 = scmp.eq.s32.totalorder %s15, 0
    %p56 = por %p54, %p55
    %s57 = ssub.s32 %s16, %s28
    %p58 = scmp.eq.s32.totalorder %s57, 0
    %s60 = sadd.s32 %s59, 1
    %s61 = scalar_select %p58, %s59, %s60
    %p64 = pneg %p58
    %p65 = scmp.eq.s32.totalorder %s9, 3
    %p66 = por %p64, %p65
    %p67 = scmp.ne.s32.totalorder %s59, %s62
    %p68 = scmp.eq.s32.totalorder %s9, 0
    %p69 = por %p67, %p68
    %p70 = scmp.ne.s32.totalorder %s59, %s62
    %p71 = scmp.eq.s32.totalorder %s14, 3
    %p72 = por %p70, %p71
    %p73 = scmp.ne.s32.totalorder %s62, %s63
    %p74 = scmp.eq.s32.totalorder %s14, 0
    %p75 = por %p73, %p74
    %p76 = scmp.ne.s32.totalorder %s62, %s63
    %p77 = scmp.eq.s32.totalorder %s15, 3
    %p78 = por %p76, %p77
    %p80 = scmp.ne.s32.totalorder %s63, %s79
    %p81 = scmp.eq.s32.totalorder %s15, 0
    %p82 = por %p80, %p81
    %s83 = ssub.s32 %s16, %s28
    %p84 = scmp.eq.s32.totalorder %s83, 0
    %s86 = sadd.s32 %s85, 1
    %s87 = scalar_select %p84, %s85, %s86
    %p90 = pneg %p84
    %p91 = scmp.eq.s32.totalorder %s9, 3
    %p92 = por %p90, %p91
    %p93 = scmp.ne.s32.totalorder %s85, %s88
    %p94 = scmp.eq.s32.totalorder %s9, 0
    %p95 = por %p93, %p94
    %p96 = scmp.ne.s32.totalorder %s85, %s88
    %p97 = scmp.eq.s32.totalorder %s14, 3
    %p98 = por %p96, %p97
    %p99 = scmp.ne.s32.totalorder %s88, %s89
    %p100 = scmp.eq.s32.totalorder %s14, 0
    %p101 = por %p99, %p100
    %p102 = scmp.ne.s32.totalorder %s88, %s89
    %p103 = scmp.eq.s32.totalorder %s15, 3
    %p104 = por %p102, %p103
    %p106 = scmp.ne.s32.totalorder %s89, %s105
    %p107 = scmp.eq.s32.totalorder %s15, 0
    %p108 = por %p106, %p107
    %p109 = scmp.le.s32.totalorder 1, %s9
    %p110 = scmp.lt.s32.totalorder %s9, 5
    %p111 = pnand %p109, %p110
    %p112 = pneg %p111
    // Predicated region
    $region9: #{upsample_forward.4} parent=5 // pred_check
      _
    $region10: #{upsample_forward.4} parent=5 // pred_check_branch
      %114 = sbr.rel (%p111) target = $region12
    $region11: #{upsample_forward.4} parent=5 // pred_region
      %s115 = ssub.s32 %s9, 1
    $region12: #{upsample_forward.4} parent=5 // pred_fallthru
      _
    %p116 = scmp.lt.s32.totalorder %s9, 4
    // Predicated region
    $region13: #{upsample_forward.4} parent=5 // pred_check
      %p117 = pneg %p116
    $region14: #{upsample_forward.4} parent=5 // pred_check_branch
      %119 = sbr.rel (%p117) target = $region16
    $region15: #{upsample_forward.4} parent=5 // pred_region
      // Predicated region
      $region17: #{upsample_forward.4} parent=15 // pred_check
        %p120 = pneg %p43
      $region18: #{upsample_forward.4} parent=15 // pred_check_branch
        %122 = sbr.rel (%p120) target = $region20
      $region19: #{upsample_forward.4} parent=15 // pred_region
        %s123 = smul.u32 64, %s17
        %p124 = scmp.lt.s32.totalorder %s16, 1
        %s125 = scalar_select %p124, %s16, 1
        %p126 = scmp.lt.s32.totalorder %s123, 127
        %s127 = scalar_select %p126, %s123, 127
        %s128 = smul.addr %s125, 128
        %s129 = sadd.s32 %s127, %s128
        %s130 = smul.addr %s129, 8
        %s131 = scalar_lea.vmem %s0, %s130
        %s132 = smul.u32 64, %s17
      $region20: #{upsample_forward.4} parent=15 // pred_fallthru
        _
    $region16: #{upsample_forward.4} parent=5 // pred_fallthru
      _
    %p133 = scmp.le.s32.totalorder 1, %s9
    %p134 = scmp.lt.s32.totalorder %s9, 5
    %p135 = pnand %p133, %p134
    %p136 = pneg %p135
    // Predicated region
    $region21: #{upsample_forward.4} parent=5 // pred_check
      _
    $region22: #{upsample_forward.4} parent=5 // pred_check_branch
      %138 = sbr.rel (%p135) target = $region24
    $region23: #{upsample_forward.4} parent=5 // pred_region
      %s139 = ssub.s32 %s9, 1
      %s140 = smul.u32 64, %s19
      %p141 = scmp.lt.s32.totalorder %s18, 1
      %s142 = scalar_select %p141, %s18, 1
      %p143 = scmp.lt.s32.totalorder %s140, 127
      %s144 = scalar_select %p143, %s140, 127
      %s145 = smul.addr %s142, 128
      %s146 = sadd.s32 %s144, %s145
      %s147 = smul.addr %s146, 8
      %s148 = scalar_lea.vmem %s0, %s147
      %p149 = pneg %p49
      %p150 = pneg %p46
      %p151 = pneg %p75
      %p152 = pneg %p72
      %p153 = scmp.lt.s32.totalorder %s18, 1
      %s154 = scalar_select %p153, %s18, 1
      %s155 = scalar_lea.vmem %s1, %s154
      %p156 = pneg %p101
      %p157 = pneg %p98
      %p158 = scmp.lt.s32.totalorder %s18, 1
      %s159 = scalar_select %p158, %s18, 1
      %s160 = scalar_lea.vmem %s2, %s159
      %s161 = smul.u32 64, %s19
      %p162 = scmp.lt.s32.totalorder %s18, 1
      %s163 = scalar_select %p162, %s18, 1
      %p164 = scmp.lt.s32.totalorder %s161, 127
      %s165 = scalar_select %p164, %s161, 127
      %s166 = smul.addr %s163, 128
      %s167 = sadd.s32 %s165, %s166
      %s168 = smul.addr %s167, 8
      %s169 = scalar_lea.vmem %s0, %s168
      %s170 = smul.u32 64, %s19
      %p171 = scmp.lt.s32.totalorder %s18, 1
      %s172 = scalar_select %p171, %s18, 1
      %s173 = scalar_lea.vmem %s1, %s172
      %p174 = scmp.lt.s32.totalorder %s18, 1
      %s175 = scalar_select %p174, %s18, 1
      %s176 = scalar_lea.vmem %s2, %s175
      %p177 = scmp.eq.s32.totalorder %s19, 0
      // Predicated region
      $region25: #{upsample_forward.4} parent=23 // pred_check
        %p178 = pneg %p177
      $region26: #{upsample_forward.4} parent=23 // pred_check_branch
        %180 = sbr.rel (%p178) target = $region28
      $region27: #{upsample_forward.4} parent=23 // pred_region
        %vm181 = vcmask 57344
        %182 = vst.msk [vmem:[%s173] sm:$0x1] %vm181, 0.0
        %183 = vst.msk [vmem:[%s176] sm:$0x1] %vm181, 0.0
      $region28: #{upsample_forward.4} parent=23 // pred_fallthru
        _
      %v184 = vld [vmem:[%s169] sm:$0xff]
      %v185 = vld [vmem:[%s169 + $0x8] sm:$0xff]
      %v186 = vld [vmem:[%s169 + $0x10] sm:$0xff]
      %v187 = vld [vmem:[%s169 + $0x18] sm:$0xff]
      %v188 = vld [vmem:[%s169 + $0x20] sm:$0xff]
      %v189 = vld [vmem:[%s169 + $0x28] sm:$0xff]
      %v190 = vld [vmem:[%s169 + $0x30] sm:$0xff]
      %v191 = vld [vmem:[%s169 + $0x38] sm:$0xff]
      %v192 = vld [vmem:[%s169 + $0x40] sm:$0xff]
      %v193 = vld [vmem:[%s169 + $0x48] sm:$0xff]
      %v194 = vld [vmem:[%s169 + $0x50] sm:$0xff]
      %v195 = vld [vmem:[%s169 + $0x58] sm:$0xff]
      %v196 = vld [vmem:[%s169 + $0x60] sm:$0xff]
      %v197 = vld [vmem:[%s169 + $0x68] sm:$0xff]
      %v198 = vld [vmem:[%s169 + $0x70] sm:$0xff]
      %v199 = vld [vmem:[%s169 + $0x78] sm:$0xff]
      %v200 = vld [vmem:[%s169 + $0x80] sm:$0xff]
      %v201 = vld [vmem:[%s169 + $0x88] sm:$0xff]
      %v202 = vld [vmem:[%s169 + $0x90] sm:$0xff]
      %v203 = vld [vmem:[%s169 + $0x98] sm:$0xff]
      %v204 = vld [vmem:[%s169 + $0xa0] sm:$0xff]
      %v205 = vld [vmem:[%s169 + $0xa8] sm:$0xff]
      %v206 = vld [vmem:[%s169 + $0xb0] sm:$0xff]
      %v207 = vld [vmem:[%s169 + $0xb8] sm:$0xff]
      %v208 = vld [vmem:[%s169 + $0xc0] sm:$0xff]
      %v209 = vld [vmem:[%s169 + $0xc8] sm:$0xff]
      %v210 = vld [vmem:[%s169 + $0xd0] sm:$0xff]
      %v211 = vld [vmem:[%s169 + $0xd8] sm:$0xff]
      %v212 = vld [vmem:[%s169 + $0xe0] sm:$0xff]
      %v213 = vld [vmem:[%s169 + $0xe8] sm:$0xff]
      %v214 = vld [vmem:[%s169 + $0xf0] sm:$0xff]
      %v215 = vld [vmem:[%s169 + $0xf8] sm:$0xff]
      %v216 = vld [vmem:[%s169 + $0x100] sm:$0xff]
      %v217 = vld [vmem:[%s169 + $0x108] sm:$0xff]
      %v218 = vld [vmem:[%s169 + $0x110] sm:$0xff]
      %v219 = vld [vmem:[%s169 + $0x118] sm:$0xff]
      %v220 = vld [vmem:[%s169 + $0x120] sm:$0xff]
      %v221 = vld [vmem:[%s169 + $0x128] sm:$0xff]
      %v222 = vld [vmem:[%s169 + $0x130] sm:$0xff]
      %v223 = vld [vmem:[%s169 + $0x138] sm:$0xff]
      %v224 = vld [vmem:[%s169 + $0x140] sm:$0xff]
      %v225 = vld [vmem:[%s169 + $0x148] sm:$0xff]
      %v226 = vld [vmem:[%s169 + $0x150] sm:$0xff]
      %v227 = vld [vmem:[%s169 + $0x158] sm:$0xff]
      %v228 = vld [vmem:[%s169 + $0x160] sm:$0xff]
      %v229 = vld [vmem:[%s169 + $0x168] sm:$0xff]
      %v230 = vld [vmem:[%s169 + $0x170] sm:$0xff]
      %v231 = vld [vmem:[%s169 + $0x178] sm:$0xff]
      %v232 = vld [vmem:[%s169 + $0x180] sm:$0xff]
      %v233 = vld [vmem:[%s169 + $0x188] sm:$0xff]
      %v234 = vld [vmem:[%s169 + $0x190] sm:$0xff]
      %v235 = vld [vmem:[%s169 + $0x198] sm:$0xff]
      %v236 = vld [vmem:[%s169 + $0x1a0] sm:$0xff]
      %v237 = vld [vmem:[%s169 + $0x1a8] sm:$0xff]
      %v238 = vld [vmem:[%s169 + $0x1b0] sm:$0xff]
      %v239 = vld [vmem:[%s169 + $0x1b8] sm:$0xff]
      %v240 = vld [vmem:[%s169 + $0x1c0] sm:$0xff]
      %v241 = vld [vmem:[%s169 + $0x1c8] sm:$0xff]
      %v242 = vld [vmem:[%s169 + $0x1d0] sm:$0xff]
      %v243 = vld [vmem:[%s169 + $0x1d8] sm:$0xff]
      %v244 = vld [vmem:[%s169 + $0x1e0] sm:$0xff]
      %v245 = vld [vmem:[%s169 + $0x1e8] sm:$0xff]
      %v246 = vld [vmem:[%s169 + $0x1f0] sm:$0xff]
      %v247 = vld [vmem:[%s169 + $0x1f8] sm:$0xff]
      %v248 = vld [vmem:[%s173] sm:$0x1]
      %vm249 = vcmask 64512
      %v250 = vsel %vm249, %v184, 0.0
      %v251 = vsel %vm249, %v185, 0.0
      %v252 = vadd.f32 %v250, %v251
      %v253 = vsel %vm249, %v186, 0.0
      %v254 = vadd.f32 %v252, %v253
      %v255 = vsel %vm249, %v187, 0.0
      %v256 = vadd.f32 %v254, %v255
      %v257 = vsel %vm249, %v188, 0.0
      %v258 = vadd.f32 %v256, %v257
      %v259 = vsel %vm249, %v189, 0.0
      %v260 = vadd.f32 %v258, %v259
      %v261 = vsel %vm249, %v190, 0.0
      %v262 = vadd.f32 %v260, %v261
      %v263 = vsel %vm249, %v191, 0.0
      %v264 = vadd.f32 %v262, %v263
      %v265 = vsel %vm249, %v192, 0.0
      %v266 = vadd.f32 %v264, %v265
      %v267 = vsel %vm249, %v193, 0.0
      %v268 = vadd.f32 %v266, %v267
      %v269 = vsel %vm249, %v194, 0.0
      %v270 = vadd.f32 %v268, %v269
      %v271 = vsel %vm249, %v195, 0.0
      %v272 = vadd.f32 %v270, %v271
      %v273 = vsel %vm249, %v196, 0.0
      %v274 = vadd.f32 %v272, %v273
      %v275 = vsel %vm249, %v197, 0.0
      %v276 = vadd.f32 %v274, %v275
      %v277 = vsel %vm249, %v198, 0.0
      %v278 = vadd.f32 %v276, %v277
      %v279 = vsel %vm249, %v199, 0.0
      %v280 = vadd.f32 %v278, %v279
      %v281 = vsel %vm249, %v200, 0.0
      %v282 = vadd.f32 %v280, %v281
      %v283 = vsel %vm249, %v201, 0.0
      %v284 = vadd.f32 %v282, %v283
      %v285 = vsel %vm249, %v202, 0.0
      %v286 = vadd.f32 %v284, %v285
      %v287 = vsel %vm249, %v203, 0.0
      %v288 = vadd.f32 %v286, %v287
      %v289 = vsel %vm249, %v204, 0.0
      %v290 = vadd.f32 %v288, %v289
      %v291 = vsel %vm249, %v205, 0.0
      %v292 = vadd.f32 %v290, %v291
      %v293 = vsel %vm249, %v206, 0.0
      %v294 = vadd.f32 %v292, %v293
      %v295 = vsel %vm249, %v207, 0.0
      %v296 = vadd.f32 %v294, %v295
      %v297 = vsel %vm249, %v208, 0.0
      %v298 = vadd.f32 %v296, %v297
      %v299 = vsel %vm249, %v209, 0.0
      %v300 = vadd.f32 %v298, %v299
      %v301 = vsel %vm249, %v210, 0.0
      %v302 = vadd.f32 %v300, %v301
      %v303 = vsel %vm249, %v211, 0.0
      %v304 = vadd.f32 %v302, %v303
      %v305 = vsel %vm249, %v212, 0.0
      %v306 = vadd.f32 %v304, %v305
      %v307 = vsel %vm249, %v213, 0.0
      %v308 = vadd.f32 %v306, %v307
      %v309 = vsel %vm249, %v214, 0.0
      %v310 = vadd.f32 %v308, %v309
      %v311 = vsel %vm249, %v215, 0.0
      %v312 = vadd.f32 %v310, %v311
      %v313 = vsel %vm249, %v216, 0.0
      %v314 = vadd.f32 %v312, %v313
      %v315 = vsel %vm249, %v217, 0.0
      %v316 = vadd.f32 %v314, %v315
      %v317 = vsel %vm249, %v218, 0.0
      %v318 = vadd.f32 %v316, %v317
      %v319 = vsel %vm249, %v219, 0.0
      %v320 = vadd.f32 %v318, %v319
      %v321 = vsel %vm249, %v220, 0.0
      %v322 = vadd.f32 %v320, %v321
      %v323 = vsel %vm249, %v221, 0.0
      %v324 = vadd.f32 %v322, %v323
      %v325 = vsel %vm249, %v222, 0.0
      %v326 = vadd.f32 %v324, %v325
      %v327 = vsel %vm249, %v223, 0.0
      %v328 = vadd.f32 %v326, %v327
      %v329 = vsel %vm249, %v224, 0.0
      %v330 = vadd.f32 %v328, %v329
      %v331 = vsel %vm249, %v225, 0.0
      %v332 = vadd.f32 %v330, %v331
      %v333 = vsel %vm249, %v226, 0.0
      %v334 = vadd.f32 %v332, %v333
      %v335 = vsel %vm249, %v227, 0.0
      %v336 = vadd.f32 %v334, %v335
      %v337 = vsel %vm249, %v228, 0.0
      %v338 = vadd.f32 %v336, %v337
      %v339 = vsel %vm249, %v229, 0.0
      %v340 = vadd.f32 %v338, %v339
      %v341 = vsel %vm249, %v230, 0.0
      %v342 = vadd.f32 %v340, %v341
      %v343 = vsel %vm249, %v231, 0.0
      %v344 = vadd.f32 %v342, %v343
      %v345 = vsel %vm249, %v232, 0.0
      %v346 = vadd.f32 %v344, %v345
      %v347 = vsel %vm249, %v233, 0.0
      %v348 = vadd.f32 %v346, %v347
      %v349 = vsel %vm249, %v234, 0.0
      %v350 = vadd.f32 %v348, %v349
      %v351 = vsel %vm249, %v235, 0.0
      %v352 = vadd.f32 %v350, %v351
      %v353 = vsel %vm249, %v236, 0.0
      %v354 = vadd.f32 %v352, %v353
      %v355 = vsel %vm249, %v237, 0.0
      %v356 = vadd.f32 %v354, %v355
      %v357 = vsel %vm249, %v238, 0.0
      %v358 = vadd.f32 %v356, %v357
      %v359 = vsel %vm249, %v239, 0.0
      %v360 = vadd.f32 %v358, %v359
      %v361 = vsel %vm249, %v240, 0.0
      %v362 = vadd.f32 %v360, %v361
      %v363 = vsel %vm249, %v241, 0.0
      %v364 = vadd.f32 %v362, %v363
      %v365 = vsel %vm249, %v242, 0.0
      %v366 = vadd.f32 %v364, %v365
      %v367 = vsel %vm249, %v243, 0.0
      %v368 = vadd.f32 %v366, %v367
      %v369 = vsel %vm249, %v244, 0.0
      %v370 = vadd.f32 %v368, %v369
      %v371 = vsel %vm249, %v245, 0.0
      %v372 = vadd.f32 %v370, %v371
      %v373 = vsel %vm249, %v246, 0.0
      %v374 = vadd.f32 %v372, %v373
      %v375 = vsel %vm249, %v247, 0.0
      %v376 = vadd.f32 %v374, %v375
      %v377 = vrot.slane %v376, 4
      %v378 = vadd.f32 %v376, %v377
      %v379 = vrot.slane %v378, 2
      %v380 = vadd.f32 %v378, %v379
      %v381 = vrot.slane %v380, 1
      %v382 = vadd.f32 %v380, %v381
      %v383 = vadd.f32 %v248, %v382
      %vm384 = vcmask 57344
      %385 = vst.msk [vmem:[%s173] sm:$0x1] %vm384, %v383
      %v386 = vld [vmem:[%s176] sm:$0x1]
      %v387 = vmul.f32 %v184, %v184
      %v388 = vmul.f32 %v185, %v185
      %v389 = vmul.f32 %v186, %v186
      %v390 = vmul.f32 %v187, %v187
      %v391 = vmul.f32 %v188, %v188
      %v392 = vmul.f32 %v189, %v189
      %v393 = vmul.f32 %v190, %v190
      %v394 = vmul.f32 %v191, %v191
      %v395 = vmul.f32 %v192, %v192
      %v396 = vmul.f32 %v193, %v193
      %v397 = vmul.f32 %v194, %v194
      %v398 = vmul.f32 %v195, %v195
      %v399 = vmul.f32 %v196, %v196
      %v400 = vmul.f32 %v197, %v197
      %v401 = vmul.f32 %v198, %v198
      %v402 = vmul.f32 %v199, %v199
      %v403 = vmul.f32 %v200, %v200
      %v404 = vmul.f32 %v201, %v201
      %v405 = vmul.f32 %v202, %v202
      %v406 = vmul.f32 %v203, %v203
      %v407 = vmul.f32 %v204, %v204
      %v408 = vmul.f32 %v205, %v205
      %v409 = vmul.f32 %v206, %v206
      %v410 = vmul.f32 %v207, %v207
      %v411 = vmul.f32 %v208, %v208
      %v412 = vmul.f32 %v209, %v209
      %v413 = vmul.f32 %v210, %v210
      %v414 = vmul.f32 %v211, %v211
      %v415 = vmul.f32 %v212, %v212
      %v416 = vmul.f32 %v213, %v213
      %v417 = vmul.f32 %v214, %v214
      %v418 = vmul.f32 %v215, %v215
      %v419 = vmul.f32 %v216, %v216
      %v420 = vmul.f32 %v217, %v217
      %v421 = vmul.f32 %v218, %v218
      %v422 = vmul.f32 %v219, %v219
      %v423 = vmul.f32 %v220, %v220
      %v424 = vmul.f32 %v221, %v221
      %v425 = vmul.f32 %v222, %v222
      %v426 = vmul.f32 %v223, %v223
      %v427 = vmul.f32 %v224, %v224
      %v428 = vmul.f32 %v225, %v225
      %v429 = vmul.f32 %v226, %v226
      %v430 = vmul.f32 %v227, %v227
      %v431 = vmul.f32 %v228, %v228
      %v432 = vmul.f32 %v229, %v229
      %v433 = vmul.f32 %v230, %v230
      %v434 = vmul.f32 %v231, %v231
      %v435 = vmul.f32 %v232, %v232
      %v436 = vmul.f32 %v233, %v233
      %v437 = vmul.f32 %v234, %v234
      %v438 = vmul.f32 %v235, %v235
      %v439 = vmul.f32 %v236, %v236
      %v440 = vmul.f32 %v237, %v237
      %v441 = vmul.f32 %v238, %v238
      %v442 = vmul.f32 %v239, %v239
      %v443 = vmul.f32 %v240, %v240
      %v444 = vmul.f32 %v241, %v241
      %v445 = vmul.f32 %v242, %v242
      %v446 = vmul.f32 %v243, %v243
      %v447 = vmul.f32 %v244, %v244
      %v448 = vmul.f32 %v245, %v245
      %v449 = vmul.f32 %v246, %v246
      %v450 = vmul.f32 %v247, %v247
      %v451 = vsel %vm249, %v387, 0.0
      %v452 = vsel %vm249, %v388, 0.0
      %v453 = vadd.f32 %v451, %v452
      %v454 = vsel %vm249, %v389, 0.0
      %v455 = vadd.f32 %v453, %v454
      %v456 = vsel %vm249, %v390, 0.0
      %v457 = vadd.f32 %v455, %v456
      %v458 = vsel %vm249, %v391, 0.0
      %v459 = vadd.f32 %v457, %v458
      %v460 = vsel %vm249, %v392, 0.0
      %v461 = vadd.f32 %v459, %v460
      %v462 = vsel %vm249, %v393, 0.0
      %v463 = vadd.f32 %v461, %v462
      %v464 = vsel %vm249, %v394, 0.0
      %v465 = vadd.f32 %v463, %v464
      %v466 = vsel %vm249, %v395, 0.0
      %v467 = vadd.f32 %v465, %v466
      %v468 = vsel %vm249, %v396, 0.0
      %v469 = vadd.f32 %v467, %v468
      %v470 = vsel %vm249, %v397, 0.0
      %v471 = vadd.f32 %v469, %v470
      %v472 = vsel %vm249, %v398, 0.0
      %v473 = vadd.f32 %v471, %v472
      %v474 = vsel %vm249, %v399, 0.0
      %v475 = vadd.f32 %v473, %v474
      %v476 = vsel %vm249, %v400, 0.0
      %v477 = vadd.f32 %v475, %v476
      %v478 = vsel %vm249, %v401, 0.0
      %v479 = vadd.f32 %v477, %v478
      %v480 = vsel %vm249, %v402, 0.0
      %v481 = vadd.f32 %v479, %v480
      %v482 = vsel %vm249, %v403, 0.0
      %v483 = vadd.f32 %v481, %v482
      %v484 = vsel %vm249, %v404, 0.0
      %v485 = vadd.f32 %v483, %v484
      %v486 = vsel %vm249, %v405, 0.0
      %v487 = vadd.f32 %v485, %v486
      %v488 = vsel %vm249, %v406, 0.0
      %v489 = vadd.f32 %v487, %v488
      %v490 = vsel %vm249, %v407, 0.0
      %v491 = vadd.f32 %v489, %v490
      %v492 = vsel %vm249, %v408, 0.0
      %v493 = vadd.f32 %v491, %v492
      %v494 = vsel %vm249, %v409, 0.0
      %v495 = vadd.f32 %v493, %v494
      %v496 = vsel %vm249, %v410, 0.0
      %v497 = vadd.f32 %v495, %v496
      %v498 = vsel %vm249, %v411, 0.0
      %v499 = vadd.f32 %v497, %v498
      %v500 = vsel %vm249, %v412, 0.0
      %v501 = vadd.f32 %v499, %v500
      %v502 = vsel %vm249, %v413, 0.0
      %v503 = vadd.f32 %v501, %v502
      %v504 = vsel %vm249, %v414, 0.0
      %v505 = vadd.f32 %v503, %v504
      %v506 = vsel %vm249, %v415, 0.0
      %v507 = vadd.f32 %v505, %v506
      %v508 = vsel %vm249, %v416, 0.0
      %v509 = vadd.f32 %v507, %v508
      %v510 = vsel %vm249, %v417, 0.0
      %v511 = vadd.f32 %v509, %v510
      %v512 = vsel %vm249, %v418, 0.0
      %v513 = vadd.f32 %v511, %v512
      %v514 = vsel %vm249, %v419, 0.0
      %v515 = vadd.f32 %v513, %v514
      %v516 = vsel %vm249, %v420, 0.0
      %v517 = vadd.f32 %v515, %v516
      %v518 = vsel %vm249, %v421, 0.0
      %v519 = vadd.f32 %v517, %v518
      %v520 = vsel %vm249, %v422, 0.0
      %v521 = vadd.f32 %v519, %v520
      %v522 = vsel %vm249, %v423, 0.0
      %v523 = vadd.f32 %v521, %v522
      %v524 = vsel %vm249, %v424, 0.0
      %v525 = vadd.f32 %v523, %v524
      %v526 = vsel %vm249, %v425, 0.0
      %v527 = vadd.f32 %v525, %v526
      %v528 = vsel %vm249, %v426, 0.0
      %v529 = vadd.f32 %v527, %v528
      %v530 = vsel %vm249, %v427, 0.0
      %v531 = vadd.f32 %v529, %v530
      %v532 = vsel %vm249, %v428, 0.0
      %v533 = vadd.f32 %v531, %v532
      %v534 = vsel %vm249, %v429, 0.0
      %v535 = vadd.f32 %v533, %v534
      %v536 = vsel %vm249, %v430, 0.0
      %v537 = vadd.f32 %v535, %v536
      %v538 = vsel %vm249, %v431, 0.0
      %v539 = vadd.f32 %v537, %v538
      %v540 = vsel %vm249, %v432, 0.0
      %v541 = vadd.f32 %v539, %v540
      %v542 = vsel %vm249, %v433, 0.0
      %v543 = vadd.f32 %v541, %v542
      %v544 = vsel %vm249, %v434, 0.0
      %v545 = vadd.f32 %v543, %v544
      %v546 = vsel %vm249, %v435, 0.0
      %v547 = vadd.f32 %v545, %v546
      %v548 = vsel %vm249, %v436, 0.0
      %v549 = vadd.f32 %v547, %v548
      %v550 = vsel %vm249, %v437, 0.0
      %v551 = vadd.f32 %v549, %v550
      %v552 = vsel %vm249, %v438, 0.0
      %v553 = vadd.f32 %v551, %v552
      %v554 = vsel %vm249, %v439, 0.0
      %v555 = vadd.f32 %v553, %v554
      %v556 = vsel %vm249, %v440, 0.0
      %v557 = vadd.f32 %v555, %v556
      %v558 = vsel %vm249, %v441, 0.0
      %v559 = vadd.f32 %v557, %v558
      %v560 = vsel %vm249, %v442, 0.0
      %v561 = vadd.f32 %v559, %v560
      %v562 = vsel %vm249, %v443, 0.0
      %v563 = vadd.f32 %v561, %v562
      %v564 = vsel %vm249, %v444, 0.0
      %v565 = vadd.f32 %v563, %v564
      %v566 = vsel %vm249, %v445, 0.0
      %v567 = vadd.f32 %v565, %v566
      %v568 = vsel %vm249, %v446, 0.0
      %v569 = vadd.f32 %v567, %v568
      %v570 = vsel %vm249, %v447, 0.0
      %v571 = vadd.f32 %v569, %v570
      %v572 = vsel %vm249, %v448, 0.0
      %v573 = vadd.f32 %v571, %v572
      %v574 = vsel %vm249, %v449, 0.0
      %v575 = vadd.f32 %v573, %v574
      %v576 = vsel %vm249, %v450, 0.0
      %v577 = vadd.f32 %v575, %v576
      %v578 = vrot.slane %v577, 4
      %v579 = vadd.f32 %v577, %v578
      %v580 = vrot.slane %v579, 2
      %v581 = vadd.f32 %v579, %v580
      %v582 = vrot.slane %v581, 1
      %v583 = vadd.f32 %v581, %v582
      %v584 = vadd.f32 %v386, %v583
      %585 = vst.msk [vmem:[%s176] sm:$0x1] %vm384, %v584
      %p586 = scmp.lt.s32.totalorder %s18, 1
      %s587 = scalar_select %p586, %s18, 1
      %s588 = scalar_lea.vmem %s1, %s587
      %p589 = scmp.lt.s32.totalorder %s18, 1
      %s590 = scalar_select %p589, %s18, 1
      %s591 = scalar_lea.vmem %s2, %s590
      // Predicated region
      $region29: #{upsample_forward.4} parent=23 // pred_check
        %p592 = pneg %p72
      $region30: #{upsample_forward.4} parent=23 // pred_check_branch
        %594 = sbr.rel (%p592) target = $region32
      $region31: #{upsample_forward.4} parent=23 // pred_region
        _
      $region32: #{upsample_forward.4} parent=23 // pred_fallthru
        _
      // Predicated region
      $region33: #{upsample_forward.4} parent=23 // pred_check
        %p595 = pneg %p98
      $region34: #{upsample_forward.4} parent=23 // pred_check_branch
        %597 = sbr.rel (%p595) target = $region36
      $region35: #{upsample_forward.4} parent=23 // pred_region
        _
      $region36: #{upsample_forward.4} parent=23 // pred_fallthru
        _
    $region24: #{upsample_forward.4} parent=5 // pred_fallthru
      _
    %p598 = scmp.le.s32.totalorder 2, %s9
    // Predicated region
    $region37: #{upsample_forward.4} parent=5 // pred_check
      %p599 = pneg %p598
    $region38: #{upsample_forward.4} parent=5 // pred_check_branch
      %601 = sbr.rel (%p599) target = $region40
    $region39: #{upsample_forward.4} parent=5 // pred_region
      %s602 = ssub.s32 %s9, 2
      // Predicated region
      $region41: #{upsample_forward.4} parent=39 // pred_check
        %p603 = pneg %p78
      $region42: #{upsample_forward.4} parent=39 // pred_check_branch
        %605 = sbr.rel (%p603) target = $region44
      $region43: #{upsample_forward.4} parent=39 // pred_region
        %p606 = scmp.lt.s32.totalorder %s20, 1
        %s607 = scalar_select %p606, %s20, 1
        %s608 = scalar_lea.vmem %s1, %s607
      $region44: #{upsample_forward.4} parent=39 // pred_fallthru
        _
      // Predicated region
      $region45: #{upsample_forward.4} parent=39 // pred_check
        %p609 = pneg %p104
      $region46: #{upsample_forward.4} parent=39 // pred_check_branch
        %611 = sbr.rel (%p609) target = $region48
      $region47: #{upsample_forward.4} parent=39 // pred_region
        %p612 = scmp.lt.s32.totalorder %s20, 1
        %s613 = scalar_select %p612, %s20, 1
        %s614 = scalar_lea.vmem %s2, %s613
      $region48: #{upsample_forward.4} parent=39 // pred_fallthru
        _
    $region40: #{upsample_forward.4} parent=5 // pred_fallthru
      _
  $region6: #{upsample_forward.4} parent=0 // loop_footer
    %s13 = sadd.s32 1, %s9
  $region7: #{upsample_forward.4} parent=0 // loop_footer_branch
    %8 = sbr.rel target = $region3
  $region8: #{upsample_forward.4} parent=0 // loop_exit
    _

// kernel: upsample_forward.5
$region0: #{upsample_forward.5}
  #allocation0 [shape = 'u32[]', space=smem, size = 0x4, offset = 0x4, fixed_abs, tag = 'smem constant byte address 0x4 - core index']
  #allocation1 [shape = 'u32[72,128]{1,0:T(1,128)}', space=vmem, size = 0x9000, scoped, tag = 'internal scratch']
  %s0 = inlined_call_operand.vmem [shape: f32[2,1024,8], index: 0, kind: input, shape index: {}]
  %s1 = inlined_call_operand.vmem [shape: f32[2,1,8], index: 1, kind: input, shape index: {}]
  %s2 = inlined_call_operand.vmem [shape: f32[2,1,8], index: 2, kind: input, shape index: {}]
  %s3 = inlined_call_operand.vmem [shape: f32[2,1024,8], index: 3, kind: output, shape index: {}]
  %s4 = sld [smem:[#allocation0]]
  $region45: #{upsample_forward.5} parent=0
    _
  %s6 = ssub.s32 1, %s4
  %s7 = scalar_select 0, %s6, %s4
  loop: start=0, step=1, limit=6
  $region2: #{upsample_forward.5} parent=0 // loop_pre_header
    _
  $region3: #{upsample_forward.5} parent=0 // loop_header
    %s9 = sphi 0, %s13
    %p10 = scmp.ge.s32.totalorder %s9, 6
    %s16 = sphi 0, %s28
    %s17 = sphi 0, %s24
    %s18 = sphi 0, %s16
    %s19 = sphi 0, %s17
    %s20 = sphi 0, %s18
    %s21 = sphi 0, %s19
    %s33 = sphi 0, %s35
    %s36 = sphi 0, %s33
    %s37 = sphi 0, %s36
    %s53 = sphi 0, %s37
    %s59 = sphi 0, %s61
    %s62 = sphi 0, %s59
    %s63 = sphi 0, %s62
    %s79 = sphi 0, %s63
    %s85 = sphi 0, %s87
    %s88 = sphi 0, %s85
    %s89 = sphi 0, %s88
    %s105 = sphi 0, %s89
    %s113 = sphi 0, %s115
    %s116 = sphi 0, %s113
    %s117 = sphi 0, %s116
    %s133 = sphi 0, %s117
  $region4: #{upsample_forward.5} parent=0 // loop_header_branch
    %12 = sbr.rel (%p10) target = $region8
  $region5: #{upsample_forward.5} parent=0 // loop_body
    %s14 = ssub.s32 %s9, 1
    %s15 = ssub.s32 %s9, 2
    %s22 = sadd.s32 1, %s17
    %p23 = scmp.ge.s32.totalorder %s22, 2
    %s24 = scalar_select %p23, 0, %s22
    %s25 = sadd.s32 1, %s16
    %s26 = scalar_select %p23, %s25, %s16
    %p27 = scmp.ge.s32.totalorder %s26, 2
    %s28 = scalar_select %p27, 0, %s26
    %s29 = ssub.s32 %s16, %s28
    %s30 = ssub.s32 %s17, %s24
    %s31 = sor.u32 %s29, %s30
    %p32 = scmp.eq.s32.totalorder %s31, 0
    %s34 = sadd.s32 %s33, 1
    %s35 = scalar_select %p32, %s33, %s34
    %p38 = pneg %p32
    %p39 = scmp.eq.s32.totalorder %s9, 3
    %p40 = por %p38, %p39
    %p41 = scmp.ne.s32.totalorder %s33, %s36
    %p42 = scmp.eq.s32.totalorder %s9, 0
    %p43 = por %p41, %p42
    %p44 = scmp.ne.s32.totalorder %s33, %s36
    %p45 = scmp.eq.s32.totalorder %s14, 3
    %p46 = por %p44, %p45
    %p47 = scmp.ne.s32.totalorder %s36, %s37
    %p48 = scmp.eq.s32.totalorder %s14, 0
    %p49 = por %p47, %p48
    %p50 = scmp.ne.s32.totalorder %s36, %s37
    %p51 = scmp.eq.s32.totalorder %s15, 3
    %p52 = por %p50, %p51
    %p54 = scmp.ne.s32.totalorder %s37, %s53
    %p55 = scmp.eq.s32.totalorder %s15, 0
    %p56 = por %p54, %p55
    %s57 = ssub.s32 %s16, %s28
    %p58 = scmp.eq.s32.totalorder %s57, 0
    %s60 = sadd.s32 %s59, 1
    %s61 = scalar_select %p58, %s59, %s60
    %p64 = pneg %p58
    %p65 = scmp.eq.s32.totalorder %s9, 3
    %p66 = por %p64, %p65
    %p67 = scmp.ne.s32.totalorder %s59, %s62
    %p68 = scmp.eq.s32.totalorder %s9, 0
    %p69 = por %p67, %p68
    %p70 = scmp.ne.s32.totalorder %s59, %s62
    %p71 = scmp.eq.s32.totalorder %s14, 3
    %p72 = por %p70, %p71
    %p73 = scmp.ne.s32.totalorder %s62, %s63
    %p74 = scmp.eq.s32.totalorder %s14, 0
    %p75 = por %p73, %p74
    %p76 = scmp.ne.s32.totalorder %s62, %s63
    %p77 = scmp.eq.s32.totalorder %s15, 3
    %p78 = por %p76, %p77
    %p80 = scmp.ne.s32.totalorder %s63, %s79
    %p81 = scmp.eq.s32.totalorder %s15, 0
    %p82 = por %p80, %p81
    %s83 = ssub.s32 %s16, %s28
    %p84 = scmp.eq.s32.totalorder %s83, 0
    %s86 = sadd.s32 %s85, 1
    %s87 = scalar_select %p84, %s85, %s86
    %p90 = pneg %p84
    %p91 = scmp.eq.s32.totalorder %s9, 3
    %p92 = por %p90, %p91
    %p93 = scmp.ne.s32.totalorder %s85, %s88
    %p94 = scmp.eq.s32.totalorder %s9, 0
    %p95 = por %p93, %p94
    %p96 = scmp.ne.s32.totalorder %s85, %s88
    %p97 = scmp.eq.s32.totalorder %s14, 3
    %p98 = por %p96, %p97
    %p99 = scmp.ne.s32.totalorder %s88, %s89
    %p100 = scmp.eq.s32.totalorder %s14, 0
    %p101 = por %p99, %p100
    %p102 = scmp.ne.s32.totalorder %s88, %s89
    %p103 = scmp.eq.s32.totalorder %s15, 3
    %p104 = por %p102, %p103
    %p106 = scmp.ne.s32.totalorder %s89, %s105
    %p107 = scmp.eq.s32.totalorder %s15, 0
    %p108 = por %p106, %p107
    %s109 = ssub.s32 %s16, %s28
    %s110 = ssub.s32 %s17, %s24
    %s111 = sor.u32 %s109, %s110
    %p112 = scmp.eq.s32.totalorder %s111, 0
    %s114 = sadd.s32 %s113, 1
    %s115 = scalar_select %p112, %s113, %s114
    %p118 = pneg %p112
    %p119 = scmp.eq.s32.totalorder %s9, 3
    %p120 = por %p118, %p119
    %p121 = scmp.ne.s32.totalorder %s113, %s116
    %p122 = scmp.eq.s32.totalorder %s9, 0
    %p123 = por %p121, %p122
    %p124 = scmp.ne.s32.totalorder %s113, %s116
    %p125 = scmp.eq.s32.totalorder %s14, 3
    %p126 = por %p124, %p125
    %p127 = scmp.ne.s32.totalorder %s116, %s117
    %p128 = scmp.eq.s32.totalorder %s14, 0
    %p129 = por %p127, %p128
    %p130 = scmp.ne.s32.totalorder %s116, %s117
    %p131 = scmp.eq.s32.totalorder %s15, 3
    %p132 = por %p130, %p131
    %p134 = scmp.ne.s32.totalorder %s117, %s133
    %p135 = scmp.eq.s32.totalorder %s15, 0
    %p136 = por %p134, %p135
    %p137 = scmp.le.s32.totalorder 1, %s9
    %p138 = scmp.lt.s32.totalorder %s9, 5
    %p139 = pnand %p137, %p138
    %p140 = pneg %p139
    // Predicated region
    $region9: #{upsample_forward.5} parent=5 // pred_check
      _
    $region10: #{upsample_forward.5} parent=5 // pred_check_branch
      %142 = sbr.rel (%p139) target = $region12
    $region11: #{upsample_forward.5} parent=5 // pred_region
      %s143 = ssub.s32 %s9, 1
    $region12: #{upsample_forward.5} parent=5 // pred_fallthru
      _
    %p144 = scmp.lt.s32.totalorder %s9, 4
    // Predicated region
    $region13: #{upsample_forward.5} parent=5 // pred_check
      %p145 = pneg %p144
    $region14: #{upsample_forward.5} parent=5 // pred_check_branch
      %147 = sbr.rel (%p145) target = $region16
    $region15: #{upsample_forward.5} parent=5 // pred_region
      // Predicated region
      $region17: #{upsample_forward.5} parent=15 // pred_check
        %p148 = pneg %p43
      $region18: #{upsample_forward.5} parent=15 // pred_check_branch
        %150 = sbr.rel (%p148) target = $region20
      $region19: #{upsample_forward.5} parent=15 // pred_region
        %s151 = smul.u32 64, %s17
        %p152 = scmp.lt.s32.totalorder %s16, 1
        %s153 = scalar_select %p152, %s16, 1
        %p154 = scmp.lt.s32.totalorder %s151, 127
        %s155 = scalar_select %p154, %s151, 127
        %s156 = smul.addr %s153, 128
        %s157 = sadd.s32 %s155, %s156
        %s158 = smul.addr %s157, 8
        %s159 = scalar_lea.vmem %s0, %s158
        %s160 = smul.u32 64, %s17
      $region20: #{upsample_forward.5} parent=15 // pred_fallthru
        _
      // Predicated region
      $region21: #{upsample_forward.5} parent=15 // pred_check
        %p161 = pneg %p69
      $region22: #{upsample_forward.5} parent=15 // pred_check_branch
        %163 = sbr.rel (%p161) target = $region24
      $region23: #{upsample_forward.5} parent=15 // pred_region
        %p164 = scmp.lt.s32.totalorder %s16, 1
        %s165 = scalar_select %p164, %s16, 1
        %s166 = scalar_lea.vmem %s1, %s165
      $region24: #{upsample_forward.5} parent=15 // pred_fallthru
        _
      // Predicated region
      $region25: #{upsample_forward.5} parent=15 // pred_check
        %p167 = pneg %p95
      $region26: #{upsample_forward.5} parent=15 // pred_check_branch
        %169 = sbr.rel (%p167) target = $region28
      $region27: #{upsample_forward.5} parent=15 // pred_region
        %p170 = scmp.lt.s32.totalorder %s16, 1
        %s171 = scalar_select %p170, %s16, 1
        %s172 = scalar_lea.vmem %s2, %s171
      $region28: #{upsample_forward.5} parent=15 // pred_fallthru
        _
    $region16: #{upsample_forward.5} parent=5 // pred_fallthru
      _
    %p173 = scmp.le.s32.totalorder 1, %s9
    %p174 = scmp.lt.s32.totalorder %s9, 5
    %p175 = pnand %p173, %p174
    %p176 = pneg %p175
    // Predicated region
    $region29: #{upsample_forward.5} parent=5 // pred_check
      _
    $region30: #{upsample_forward.5} parent=5 // pred_check_branch
      %178 = sbr.rel (%p175) target = $region32
    $region31: #{upsample_forward.5} parent=5 // pred_region
      %s179 = ssub.s32 %s9, 1
      %s180 = smul.u32 64, %s19
      %p181 = scmp.lt.s32.totalorder %s18, 1
      %s182 = scalar_select %p181, %s18, 1
      %p183 = scmp.lt.s32.totalorder %s180, 127
      %s184 = scalar_select %p183, %s180, 127
      %s185 = smul.addr %s182, 128
      %s186 = sadd.s32 %s184, %s185
      %s187 = smul.addr %s186, 8
      %s188 = scalar_lea.vmem %s0, %s187
      %p189 = pneg %p49
      %p190 = pneg %p46
      %p191 = scmp.lt.s32.totalorder %s18, 1
      %s192 = scalar_select %p191, %s18, 1
      %s193 = scalar_lea.vmem %s1, %s192
      %p194 = pneg %p75
      %p195 = pneg %p72
      %p196 = scmp.lt.s32.totalorder %s18, 1
      %s197 = scalar_select %p196, %s18, 1
      %s198 = scalar_lea.vmem %s2, %s197
      %p199 = pneg %p101
      %p200 = pneg %p98
      %p201 = pneg %p129
      %p202 = pneg %p126
      %s203 = smul.u32 64, %s19
      %p204 = scmp.lt.s32.totalorder %s18, 1
      %s205 = scalar_select %p204, %s18, 1
      %p206 = scmp.lt.s32.totalorder %s203, 127
      %s207 = scalar_select %p206, %s203, 127
      %s208 = smul.addr %s205, 128
      %s209 = sadd.s32 %s207, %s208
      %s210 = smul.addr %s209, 8
      %s211 = scalar_lea.vmem %s3, %s210
      %s212 = smul.u32 64, %s19
      %p213 = scmp.lt.s32.totalorder %s18, 1
      %s214 = scalar_select %p213, %s18, 1
      %p215 = scmp.lt.s32.totalorder %s212, 127
      %s216 = scalar_select %p215, %s212, 127
      %s217 = smul.addr %s214, 128
      %s218 = sadd.s32 %s216, %s217
      %s219 = smul.addr %s218, 8
      %s220 = scalar_lea.vmem %s0, %s219
      %s221 = smul.u32 64, %s19
      %p222 = scmp.lt.s32.totalorder %s18, 1
      %s223 = scalar_select %p222, %s18, 1
      %s224 = scalar_lea.vmem %s1, %s223
      %p225 = scmp.lt.s32.totalorder %s18, 1
      %s226 = scalar_select %p225, %s18, 1
      %s227 = scalar_lea.vmem %s2, %s226
      %s228 = smul.u32 64, %s19
      %p229 = scmp.lt.s32.totalorder %s18, 1
      %s230 = scalar_select %p229, %s18, 1
      %p231 = scmp.lt.s32.totalorder %s228, 127
      %s232 = scalar_select %p231, %s228, 127
      %s233 = smul.addr %s230, 128
      %s234 = sadd.s32 %s232, %s233
      %s235 = smul.addr %s234, 8
      %s236 = scalar_lea.vmem %s3, %s235
      %s237 = smul.u32 64, %s19
      %v238 = vld [vmem:[%s220] sm:$0xff]
      %v239 = vld [vmem:[%s220 + $0x8] sm:$0xff]
      %v240 = vld [vmem:[%s220 + $0x10] sm:$0xff]
      %v241 = vld [vmem:[%s220 + $0x18] sm:$0xff]
      %v242 = vld [vmem:[%s220 + $0x20] sm:$0xff]
      %v243 = vld [vmem:[%s220 + $0x28] sm:$0xff]
      %v244 = vld [vmem:[%s220 + $0x30] sm:$0xff]
      %v245 = vld [vmem:[%s220 + $0x38] sm:$0xff]
      %v246 = vld [vmem:[%s220 + $0x40] sm:$0xff]
      %v247 = vld [vmem:[%s220 + $0x48] sm:$0xff]
      %v248 = vld [vmem:[%s220 + $0x50] sm:$0xff]
      %v249 = vld [vmem:[%s220 + $0x58] sm:$0xff]
      %v250 = vld [vmem:[%s220 + $0x60] sm:$0xff]
      %v251 = vld [vmem:[%s220 + $0x68] sm:$0xff]
      %v252 = vld [vmem:[%s220 + $0x70] sm:$0xff]
      %v253 = vld [vmem:[%s220 + $0x78] sm:$0xff]
      %v254 = vld [vmem:[%s220 + $0x80] sm:$0xff]
      %v255 = vld [vmem:[%s220 + $0x88] sm:$0xff]
      %v256 = vld [vmem:[%s220 + $0x90] sm:$0xff]
      %v257 = vld [vmem:[%s220 + $0x98] sm:$0xff]
      %v258 = vld [vmem:[%s220 + $0xa0] sm:$0xff]
      %v259 = vld [vmem:[%s220 + $0xa8] sm:$0xff]
      %v260 = vld [vmem:[%s220 + $0xb0] sm:$0xff]
      %v261 = vld [vmem:[%s220 + $0xb8] sm:$0xff]
      %v262 = vld [vmem:[%s220 + $0xc0] sm:$0xff]
      %v263 = vld [vmem:[%s220 + $0xc8] sm:$0xff]
      %v264 = vld [vmem:[%s220 + $0xd0] sm:$0xff]
      %v265 = vld [vmem:[%s220 + $0xd8] sm:$0xff]
      %v266 = vld [vmem:[%s220 + $0xe0] sm:$0xff]
      %v267 = vld [vmem:[%s220 + $0xe8] sm:$0xff]
      %v268 = vld [vmem:[%s220 + $0xf0] sm:$0xff]
      %v269 = vld [vmem:[%s220 + $0xf8] sm:$0xff]
      %v270 = vld [vmem:[%s220 + $0x100] sm:$0xff]
      %v271 = vld [vmem:[%s220 + $0x108] sm:$0xff]
      %v272 = vld [vmem:[%s220 + $0x110] sm:$0xff]
      %v273 = vld [vmem:[%s220 + $0x118] sm:$0xff]
      %v274 = vld [vmem:[%s220 + $0x120] sm:$0xff]
      %v275 = vld [vmem:[%s220 + $0x128] sm:$0xff]
      %v276 = vld [vmem:[%s220 + $0x130] sm:$0xff]
      %v277 = vld [vmem:[%s220 + $0x138] sm:$0xff]
      %v278 = vld [vmem:[%s220 + $0x140] sm:$0xff]
      %v279 = vld [vmem:[%s220 + $0x148] sm:$0xff]
      %v280 = vld [vmem:[%s220 + $0x150] sm:$0xff]
      %v281 = vld [vmem:[%s220 + $0x158] sm:$0xff]
      %v282 = vld [vmem:[%s220 + $0x160] sm:$0xff]
      %v283 = vld [vmem:[%s220 + $0x168] sm:$0xff]
      %v284 = vld [vmem:[%s220 + $0x170] sm:$0xff]
      %v285 = vld [vmem:[%s220 + $0x178] sm:$0xff]
      %v286 = vld [vmem:[%s220 + $0x180] sm:$0xff]
      %v287 = vld [vmem:[%s220 + $0x188] sm:$0xff]
      %v288 = vld [vmem:[%s220 + $0x190] sm:$0xff]
      %v289 = vld [vmem:[%s220 + $0x198] sm:$0xff]
      %v290 = vld [vmem:[%s220 + $0x1a0] sm:$0xff]
      %v291 = vld [vmem:[%s220 + $0x1a8] sm:$0xff]
      %v292 = vld [vmem:[%s220 + $0x1b0] sm:$0xff]
      %v293 = vld [vmem:[%s220 + $0x1b8] sm:$0xff]
      %v294 = vld [vmem:[%s220 + $0x1c0] sm:$0xff]
      %v295 = vld [vmem:[%s220 + $0x1c8] sm:$0xff]
      %v296 = vld [vmem:[%s220 + $0x1d0] sm:$0xff]
      %v297 = vld [vmem:[%s220 + $0x1d8] sm:$0xff]
      %v298 = vld [vmem:[%s220 + $0x1e0] sm:$0xff]
      %v299 = vld [vmem:[%s220 + $0x1e8] sm:$0xff]
      %v300 = vld [vmem:[%s220 + $0x1f0] sm:$0xff]
      %v301 = vld [vmem:[%s220 + $0x1f8] sm:$0xff]
      %v302 = vld [vmem:[%s224] sm:$0x1]
      %v304 = vperm.slane %v302, 0
      %v306 = vsub.f32 %v238, %v304
      %v307 = vsub.f32 %v239, %v304
      %v308 = vsub.f32 %v240, %v304
      %v309 = vsub.f32 %v241, %v304
      %v310 = vsub.f32 %v242, %v304
      %v311 = vsub.f32 %v243, %v304
      %v312 = vsub.f32 %v244, %v304
      %v313 = vsub.f32 %v245, %v304
      %v314 = vsub.f32 %v246, %v304
      %v315 = vsub.f32 %v247, %v304
      %v316 = vsub.f32 %v248, %v304
      %v317 = vsub.f32 %v249, %v304
      %v318 = vsub.f32 %v250, %v304
      %v319 = vsub.f32 %v251, %v304
      %v320 = vsub.f32 %v252, %v304
      %v321 = vsub.f32 %v253, %v304
      %v322 = vsub.f32 %v254, %v304
      %v323 = vsub.f32 %v255, %v304
      %v324 = vsub.f32 %v256, %v304
      %v325 = vsub.f32 %v257, %v304
      %v326 = vsub.f32 %v258, %v304
      %v327 = vsub.f32 %v259, %v304
      %v328 = vsub.f32 %v260, %v304
      %v329 = vsub.f32 %v261, %v304
      %v330 = vsub.f32 %v262, %v304
      %v331 = vsub.f32 %v263, %v304
      %v332 = vsub.f32 %v264, %v304
      %v333 = vsub.f32 %v265, %v304
      %v334 = vsub.f32 %v266, %v304
      %v335 = vsub.f32 %v267, %v304
      %v336 = vsub.f32 %v268, %v304
      %v337 = vsub.f32 %v269, %v304
      %v338 = vsub.f32 %v270, %v304
      %v339 = vsub.f32 %v271, %v304
      %v340 = vsub.f32 %v272, %v304
      %v341 = vsub.f32 %v273, %v304
      %v342 = vsub.f32 %v274, %v304
      %v343 = vsub.f32 %v275, %v304
      %v344 = vsub.f32 %v276, %v304
      %v345 = vsub.f32 %v277, %v304
      %v346 = vsub.f32 %v278, %v304
      %v347 = vsub.f32 %v279, %v304
      %v348 = vsub.f32 %v280, %v304
      %v349 = vsub.f32 %v281, %v304
      %v350 = vsub.f32 %v282, %v304
      %v351 = vsub.f32 %v283, %v304
      %v352 = vsub.f32 %v284, %v304
      %v353 = vsub.f32 %v285, %v304
      %v354 = vsub.f32 %v286, %v304
      %v355 = vsub.f32 %v287, %v304
      %v356 = vsub.f32 %v288, %v304
      %v357 = vsub.f32 %v289, %v304
      %v358 = vsub.f32 %v290, %v304
      %v359 = vsub.f32 %v291, %v304
      %v360 = vsub.f32 %v292, %v304
      %v361 = vsub.f32 %v293, %v304
      %v362 = vsub.f32 %v294, %v304
      %v363 = vsub.f32 %v295, %v304
      %v364 = vsub.f32 %v296, %v304
      %v365 = vsub.f32 %v297, %v304
      %v366 = vsub.f32 %v298, %v304
      %v367 = vsub.f32 %v299, %v304
      %v368 = vsub.f32 %v300, %v304
      %v369 = vsub.f32 %v301, %v304
      %v370 = vld [vmem:[%s227] sm:$0x1]
      %v372 = vperm.slane %v370, 0
      %v374 = vmul.f32 %v306, %v372
      %v375 = vmul.f32 %v307, %v372
      %v376 = vmul.f32 %v308, %v372
      %v377 = vmul.f32 %v309, %v372
      %v378 = vmul.f32 %v310, %v372
      %v379 = vmul.f32 %v311, %v372
      %v380 = vmul.f32 %v312, %v372
      %v381 = vmul.f32 %v313, %v372
      %v382 = vmul.f32 %v314, %v372
      %v383 = vmul.f32 %v315, %v372
      %v384 = vmul.f32 %v316, %v372
      %v385 = vmul.f32 %v317, %v372
      %v386 = vmul.f32 %v318, %v372
      %v387 = vmul.f32 %v319, %v372
      %v388 = vmul.f32 %v320, %v372
      %v389 = vmul.f32 %v321, %v372
      %v390 = vmul.f32 %v322, %v372
      %v391 = vmul.f32 %v323, %v372
      %v392 = vmul.f32 %v324, %v372
      %v393 = vmul.f32 %v325, %v372
      %v394 = vmul.f32 %v326, %v372
      %v395 = vmul.f32 %v327, %v372
      %v396 = vmul.f32 %v328, %v372
      %v397 = vmul.f32 %v329, %v372
      %v398 = vmul.f32 %v330, %v372
      %v399 = vmul.f32 %v331, %v372
      %v400 = vmul.f32 %v332, %v372
      %v401 = vmul.f32 %v333, %v372
      %v402 = vmul.f32 %v334, %v372
      %v403 = vmul.f32 %v335, %v372
      %v404 = vmul.f32 %v336, %v372
      %v405 = vmul.f32 %v337, %v372
      %v406 = vmul.f32 %v338, %v372
      %v407 = vmul.f32 %v339, %v372
      %v408 = vmul.f32 %v340, %v372
      %v409 = vmul.f32 %v341, %v372
      %v410 = vmul.f32 %v342, %v372
      %v411 = vmul.f32 %v343, %v372
      %v412 = vmul.f32 %v344, %v372
      %v413 = vmul.f32 %v345, %v372
      %v414 = vmul.f32 %v346, %v372
      %v415 = vmul.f32 %v347, %v372
      %v416 = vmul.f32 %v348, %v372
      %v417 = vmul.f32 %v349, %v372
      %v418 = vmul.f32 %v350, %v372
      %v419 = vmul.f32 %v351, %v372
      %v420 = vmul.f32 %v352, %v372
      %v421 = vmul.f32 %v353, %v372
      %v422 = vmul.f32 %v354, %v372
      %v423 = vmul.f32 %v355, %v372
      %v424 = vmul.f32 %v356, %v372
      %v425 = vmul.f32 %v357, %v372
      %v426 = vmul.f32 %v358, %v372
      %v427 = vmul.f32 %v359, %v372
      %v428 = vmul.f32 %v360, %v372
      %v429 = vmul.f32 %v361, %v372
      %v430 = vmul.f32 %v362, %v372
      %v431 = vmul.f32 %v363, %v372
      %v432 = vmul.f32 %v364, %v372
      %v433 = vmul.f32 %v365, %v372
      %v434 = vmul.f32 %v366, %v372
      %v435 = vmul.f32 %v367, %v372
      %v436 = vmul.f32 %v368, %v372
      %v437 = vmul.f32 %v369, %v372
      %vm438 = vcmask 64512
      %439 = vst.msk [vmem:[%s236] sm:$0xff] %vm438, %v374
      %440 = vst.msk [vmem:[%s236 + $0x8] sm:$0xff] %vm438, %v375
      %441 = vst.msk [vmem:[%s236 + $0x10] sm:$0xff] %vm438, %v376
      %442 = vst.msk [vmem:[%s236 + $0x18] sm:$0xff] %vm438, %v377
      %443 = vst.msk [vmem:[%s236 + $0x20] sm:$0xff] %vm438, %v378
      %444 = vst.msk [vmem:[%s236 + $0x28] sm:$0xff] %vm438, %v379
      %445 = vst.msk [vmem:[%s236 + $0x30] sm:$0xff] %vm438, %v380
      %446 = vst.msk [vmem:[%s236 + $0x38] sm:$0xff] %vm438, %v381
      %447 = vst.msk [vmem:[%s236 + $0x40] sm:$0xff] %vm438, %v382
      %448 = vst.msk [vmem:[%s236 + $0x48] sm:$0xff] %vm438, %v383
      %449 = vst.msk [vmem:[%s236 + $0x50] sm:$0xff] %vm438, %v384
      %450 = vst.msk [vmem:[%s236 + $0x58] sm:$0xff] %vm438, %v385
      %451 = vst.msk [vmem:[%s236 + $0x60] sm:$0xff] %vm438, %v386
      %452 = vst.msk [vmem:[%s236 + $0x68] sm:$0xff] %vm438, %v387
      %453 = vst.msk [vmem:[%s236 + $0x70] sm:$0xff] %vm438, %v388
      %454 = vst.msk [vmem:[%s236 + $0x78] sm:$0xff] %vm438, %v389
      %455 = vst.msk [vmem:[%s236 + $0x80] sm:$0xff] %vm438, %v390
      %456 = vst.msk [vmem:[%s236 + $0x88] sm:$0xff] %vm438, %v391
      %457 = vst.msk [vmem:[%s236 + $0x90] sm:$0xff] %vm438, %v392
      %458 = vst.msk [vmem:[%s236 + $0x98] sm:$0xff] %vm438, %v393
      %459 = vst.msk [vmem:[%s236 + $0xa0] sm:$0xff] %vm438, %v394
      %460 = vst.msk [vmem:[%s236 + $0xa8] sm:$0xff] %vm438, %v395
      %461 = vst.msk [vmem:[%s236 + $0xb0] sm:$0xff] %vm438, %v396
      %462 = vst.msk [vmem:[%s236 + $0xb8] sm:$0xff] %vm438, %v397
      %463 = vst.msk [vmem:[%s236 + $0xc0] sm:$0xff] %vm438, %v398
      %464 = vst.msk [vmem:[%s236 + $0xc8] sm:$0xff] %vm438, %v399
      %465 = vst.msk [vmem:[%s236 + $0xd0] sm:$0xff] %vm438, %v400
      %466 = vst.msk [vmem:[%s236 + $0xd8] sm:$0xff] %vm438, %v401
      %467 = vst.msk [vmem:[%s236 + $0xe0] sm:$0xff] %vm438, %v402
      %468 = vst.msk [vmem:[%s236 + $0xe8] sm:$0xff] %vm438, %v403
      %469 = vst.msk [vmem:[%s236 + $0xf0] sm:$0xff] %vm438, %v404
      %470 = vst.msk [vmem:[%s236 + $0xf8] sm:$0xff] %vm438, %v405
      %471 = vst.msk [vmem:[%s236 + $0x100] sm:$0xff] %vm438, %v406
      %472 = vst.msk [vmem:[%s236 + $0x108] sm:$0xff] %vm438, %v407
      %473 = vst.msk [vmem:[%s236 + $0x110] sm:$0xff] %vm438, %v408
      %474 = vst.msk [vmem:[%s236 + $0x118] sm:$0xff] %vm438, %v409
      %475 = vst.msk [vmem:[%s236 + $0x120] sm:$0xff] %vm438, %v410
      %476 = vst.msk [vmem:[%s236 + $0x128] sm:$0xff] %vm438, %v411
      %477 = vst.msk [vmem:[%s236 + $0x130] sm:$0xff] %vm438, %v412
      %478 = vst.msk [vmem:[%s236 + $0x138] sm:$0xff] %vm438, %v413
      %479 = vst.msk [vmem:[%s236 + $0x140] sm:$0xff] %vm438, %v414
      %480 = vst.msk [vmem:[%s236 + $0x148] sm:$0xff] %vm438, %v415
      %481 = vst.msk [vmem:[%s236 + $0x150] sm:$0xff] %vm438, %v416
      %482 = vst.msk [vmem:[%s236 + $0x158] sm:$0xff] %vm438, %v417
      %483 = vst.msk [vmem:[%s236 + $0x160] sm:$0xff] %vm438, %v418
      %484 = vst.msk [vmem:[%s236 + $0x168] sm:$0xff] %vm438, %v419
      %485 = vst.msk [vmem:[%s236 + $0x170] sm:$0xff] %vm438, %v420
      %486 = vst.msk [vmem:[%s236 + $0x178] sm:$0xff] %vm438, %v421
      %487 = vst.msk [vmem:[%s236 + $0x180] sm:$0xff] %vm438, %v422
      %488 = vst.msk [vmem:[%s236 + $0x188] sm:$0xff] %vm438, %v423
      %489 = vst.msk [vmem:[%s236 + $0x190] sm:$0xff] %vm438, %v424
      %490 = vst.msk [vmem:[%s236 + $0x198] sm:$0xff] %vm438, %v425
      %491 = vst.msk [vmem:[%s236 + $0x1a0] sm:$0xff] %vm438, %v426
      %492 = vst.msk [vmem:[%s236 + $0x1a8] sm:$0xff] %vm438, %v427
      %493 = vst.msk [vmem:[%s236 + $0x1b0] sm:$0xff] %vm438, %v428
      %494 = vst.msk [vmem:[%s236 + $0x1b8] sm:$0xff] %vm438, %v429
      %495 = vst.msk [vmem:[%s236 + $0x1c0] sm:$0xff] %vm438, %v430
      %496 = vst.msk [vmem:[%s236 + $0x1c8] sm:$0xff] %vm438, %v431
      %497 = vst.msk [vmem:[%s236 + $0x1d0] sm:$0xff] %vm438, %v432
      %498 = vst.msk [vmem:[%s236 + $0x1d8] sm:$0xff] %vm438, %v433
      %499 = vst.msk [vmem:[%s236 + $0x1e0] sm:$0xff] %vm438, %v434
      %500 = vst.msk [vmem:[%s236 + $0x1e8] sm:$0xff] %vm438, %v435
      %501 = vst.msk [vmem:[%s236 + $0x1f0] sm:$0xff] %vm438, %v436
      %502 = vst.msk [vmem:[%s236 + $0x1f8] sm:$0xff] %vm438, %v437
      %s503 = smul.u32 64, %s19
      %p504 = scmp.lt.s32.totalorder %s18, 1
      %s505 = scalar_select %p504, %s18, 1
      %p506 = scmp.lt.s32.totalorder %s503, 127
      %s507 = scalar_select %p506, %s503, 127
      %s508 = smul.addr %s505, 128
      %s509 = sadd.s32 %s507, %s508
      %s510 = smul.addr %s509, 8
      %s511 = scalar_lea.vmem %s3, %s510
      // Predicated region
      $region33: #{upsample_forward.5} parent=31 // pred_check
        %p512 = pneg %p126
      $region34: #{upsample_forward.5} parent=31 // pred_check_branch
        %514 = sbr.rel (%p512) target = $region36
      $region35: #{upsample_forward.5} parent=31 // pred_region
        %s515 = smul.u32 64, %s19
      $region36: #{upsample_forward.5} parent=31 // pred_fallthru
        _
    $region32: #{upsample_forward.5} parent=5 // pred_fallthru
      _
    %p516 = scmp.le.s32.totalorder 2, %s9
    // Predicated region
    $region37: #{upsample_forward.5} parent=5 // pred_check
      %p517 = pneg %p516
    $region38: #{upsample_forward.5} parent=5 // pred_check_branch
      %519 = sbr.rel (%p517) target = $region40
    $region39: #{upsample_forward.5} parent=5 // pred_region
      %s520 = ssub.s32 %s9, 2
      // Predicated region
      $region41: #{upsample_forward.5} parent=39 // pred_check
        %p521 = pneg %p132
      $region42: #{upsample_forward.5} parent=39 // pred_check_branch
        %523 = sbr.rel (%p521) target = $region44
      $region43: #{upsample_forward.5} parent=39 // pred_region
        %s524 = smul.u32 64, %s21
        %p525 = scmp.lt.s32.totalorder %s20, 1
        %s526 = scalar_select %p525, %s20, 1
        %p527 = scmp.lt.s32.totalorder %s524, 127
        %s528 = scalar_select %p527, %s524, 127
        %s529 = smul.addr %s526, 128
        %s530 = sadd.s32 %s528, %s529
        %s531 = smul.addr %s530, 8
        %s532 = scalar_lea.vmem %s3, %s531
      $region44: #{upsample_forward.5} parent=39 // pred_fallthru
        _
    $region40: #{upsample_forward.5} parent=5 // pred_fallthru
      _
  $region6: #{upsample_forward.5} parent=0 // loop_footer
    %s13 = sadd.s32 1, %s9
  $region7: #{upsample_forward.5} parent=0 // loop_footer_branch
    %8 = sbr.rel target = $region3
  $region8: #{upsample_forward.5} parent=0 // loop_exit
    _

</llo_original>
